<compile_context>
chip_gen: v7x
topology: tpu7x:2x2x1
jax: 0.10.0
libtpu: 0.0.40
codegen_flags: <defaults>
</compile_context>

<pallas_src>
import math

import jax
import jax.numpy as jnp
from jax.experimental import pallas as pl
from jax.experimental.pallas import tpu as pltpu

# ---------------- small configuration consistent with the module ----------------
B = 2                  # batch
S = 8                  # sequence length
D_FEAT_IN = 4          # d_feat_in
D_TIME_IN = 4          # d_time_in
D_FEAT = 16            # d_feat
D_TIME = 16            # d_time
D_MODEL = D_FEAT + D_TIME          # 32
NHEAD = 4
HEAD_DIM = D_MODEL // NHEAD        # 8
DIM_FF = 64                        # dim_feedforward
NUM_LAYERS = 2                     # num_encoder_layers
LN_EPS = 1e-5                      # PyTorch LayerNorm default eps

D_IN = D_FEAT_IN + D_TIME_IN       # 8   (fused [x|t] input width)
SCALE = 1.0 / math.sqrt(HEAD_DIM)
BS = B * S                         # 16  activation rows
R = NHEAD * BS                     # 64  head-replicated rows
SLAB_W = 4 * D_MODEL               # 128 lane-dense [Wq'|Wk|Wv|Wo] slab width
ROWS_PER_LAYER = 8                 # qkv_bias, bo, ln1g, ln1b, b1, b2, ln2g, ln2b

# power-of-two shifts used to build the constant masks in-kernel
_SH_HD = HEAD_DIM.bit_length() - 1   # /8
_SH_BS = BS.bit_length() - 1         # /16
_SH_S = S.bit_length() - 1           # /8
assert HEAD_DIM == 1 << _SH_HD and BS == 1 << _SH_BS and S == 1 << _SH_S


def _layernorm(x, g, b):
    mu = jnp.mean(x, axis=-1, keepdims=True)
    xc = x - mu
    var = jnp.mean(xc * xc, axis=-1, keepdims=True)
    return xc * jax.lax.rsqrt(var + LN_EPS) * g + b


# ---------------------------------- kernel ----------------------------------
def featurizer_kernel(xin_ref, w_emb_ref, w_attn_ref, w_ff1_ref, w_ff2_ref,
                      vec_ref, o_ref):
    """Grid-less: the whole (B*S, ...) problem is resident in VMEM."""
    f32 = jnp.float32

    def vrow(idx, width=D_MODEL):
        # one packed bias / LayerNorm row (static slice of the 2-D slab)
        return vec_ref[idx:idx + 1, 0:width]

    # ---- constant masks, built once from 2-D iota (hoisted out of the loop) ----
    # replicated rows r = h*(B*S) + b*S + q
    rows = jax.lax.broadcasted_iota(jnp.int32, (R, D_MODEL), 0)
    cols = jax.lax.broadcasted_iota(jnp.int32, (R, D_MODEL), 1)
    qv_mask = ((cols >> _SH_HD) == (rows >> _SH_BS)).astype(f32)        # (64, 32)

    rr = jax.lax.broadcasted_iota(jnp.int32, (R, R), 0)
    cc = jax.lax.broadcasted_iota(jnp.int32, (R, R), 1)
    attn_bias = jnp.where((rr >> _SH_S) == (cc >> _SH_S),
                          f32(0.0), f32(-1e9))                          # (64, 64)

    pr = jax.lax.broadcasted_iota(jnp.int32, (B, BS), 0)
    pc = jax.lax.broadcasted_iota(jnp.int32, (B, BS), 1)
    pool_mat = ((pc >> _SH_S) == pr).astype(f32)                        # (2, 16)

    # ---- fused embedding: [x|t] @ blockdiag(Wf, Wt) + [bf|bt] -> (16, 32) ----
    src = jnp.dot(xin_ref[...], w_emb_ref[...],
                  preferred_element_type=f32) + vrow(0)

    for l in range(NUM_LAYERS):                     # unrolled; layer count is small
        vb = 1 + ROWS_PER_LAYER * l
        w_qkvo = w_attn_ref[l * D_MODEL:(l + 1) * D_MODEL, :]           # (32, 128)
        w1 = w_ff1_ref[...][:, l * DIM_FF:(l + 1) * DIM_FF]             # (32, 64)
        w2 = w_ff2_ref[...][:, l * D_MODEL:(l + 1) * D_MODEL]           # (64, 32)

        # ---- multi-head self-attention (scale pre-folded into Wq / bq) ----
        qkvo = jnp.dot(src, w_qkvo, preferred_element_type=f32) + vrow(vb + 0, SLAB_W)
        qkvo_rep = jnp.concatenate([qkvo] * NHEAD, axis=0)              # (64, 128)
        q = qkvo_rep[:, 0 * D_MODEL:1 * D_MODEL] * qv_mask              # head-masked
        k = qkvo_rep[:, 1 * D_MODEL:2 * D_MODEL]
        v = qkvo_rep[:, 2 * D_MODEL:3 * D_MODEL] * qv_mask
        wo = w_qkvo[:, 3 * D_MODEL:4 * D_MODEL]                         # (32, 32)

        # scores: row (h,b,q) x col (h,b,k); other (head,batch) blocks masked out
        s = jnp.einsum("rd,cd->rc", q, k, preferred_element_type=f32) + attn_bias
        s = s - jnp.max(s, axis=-1, keepdims=True)
        p = jnp.exp(s)
        p = p * pl.reciprocal(jnp.sum(p, axis=-1, keepdims=True), approx=False)

        o_big = jnp.dot(p, v, preferred_element_type=f32)               # (64, 32)
        proj = jnp.dot(o_big, wo, preferred_element_type=f32)           # (64, 32)
        attn = proj[0:BS]                                               # sum over heads
        for h in range(1, NHEAD):
            attn = attn + proj[h * BS:(h + 1) * BS]
        attn = attn + vrow(vb + 1)
        src = _layernorm(src + attn, vrow(vb + 2), vrow(vb + 3))

        # ---- feed forward (ReLU; dropout = identity in eval mode) ----
        ff = jnp.dot(src, w1, preferred_element_type=f32) + vrow(vb + 4, DIM_FF)
        ff = jnp.maximum(ff, 0.0)
        ff = jnp.dot(ff, w2, preferred_element_type=f32) + vrow(vb + 5)
        src = _layernorm(src + ff, vrow(vb + 6), vrow(vb + 7))

    # padding_mask is None -> sum over seq; single MXU op vs constant pool matrix
    o_ref[...] = jnp.dot(pool_mat, src, preferred_element_type=f32)     # (2, 32)


# ------------------------------ host-side packing ------------------------------
def pack_params(P):
    """Pack per-tensor params into a few lane-dense slabs (trace time, free)."""
    # block-diagonal embedding weight + concatenated bias
    w_emb = jnp.zeros((D_IN, D_MODEL), jnp.float32)
    w_emb = w_emb.at[:D_FEAT_IN, :D_FEAT].set(P["wf"])
    w_emb = w_emb.at[D_FEAT_IN:, D_FEAT:].set(P["wt"])
    b_emb = jnp.concatenate([P["bf"], P["bt"]])                        # (32,)

    # lane-dense attention slab, scale folded into Wq: (L*32, 128)
    w_attn = jnp.concatenate(
        [jnp.concatenate([P["wq"][l] * SCALE, P["wk"][l], P["wv"][l], P["wo"][l]],
                         axis=1) for l in range(NUM_LAYERS)], axis=0)

    # lane-packed FF weights: (32, L*64) and (64, L*32)
    w_ff1 = jnp.concatenate([P["w1"][l] for l in range(NUM_LAYERS)], axis=1)
    w_ff2 = jnp.concatenate([P["w2"][l] for l in range(NUM_LAYERS)], axis=1)

    # 2-D bias / LayerNorm slab (rows padded to 128 lanes, row count to 8)
    def row(vct):
        return jnp.pad(vct, (0, SLAB_W - vct.shape[0]))[None, :]

    rows = [row(b_emb)]
    for l in range(NUM_LAYERS):
        qkv_bias = jnp.concatenate([P["bq"][l] * SCALE, P["bk"][l], P["bv"][l]])
        rows += [row(qkv_bias), row(P["bo"][l]),
                 row(P["ln1g"][l]), row(P["ln1b"][l]),
                 row(P["b1"][l]), row(P["b2"][l]),
                 row(P["ln2g"][l]), row(P["ln2b"][l])]
    pad = (-len(rows)) % 8
    if pad:
        rows.append(jnp.zeros((pad, SLAB_W), jnp.float32))
    vecs = jnp.concatenate(rows, axis=0)                               # (24, 128)

    return w_emb, w_attn, w_ff1, w_ff2, vecs


def transformer_featurizer(x, t, params):
    # fold batch into rows and fuse the feat/time inputs -> one (B*S, 8) slab
    xin = jnp.concatenate([x, t], axis=-1).reshape(B * S, D_IN)
    packed = pack_params(params)

    vmem = pl.BlockSpec(memory_space=pltpu.MemorySpace.VMEM)
    return pl.pallas_call(
        featurizer_kernel,
        out_shape=jax.ShapeDtypeStruct((B, D_MODEL), jnp.float32),
        in_specs=[vmem] * (1 + len(packed)),        # whole arrays in VMEM, no grid
        out_specs=vmem,
    )(xin, *packed)


# ---------------------------- pure-JAX reference ----------------------------
def reference(x, t, P):
    hp = jax.lax.Precision.HIGHEST

    def ln(z, g, b):
        mu = z.mean(-1, keepdims=True)
        var = ((z - mu) ** 2).mean(-1, keepdims=True)
        return (z - mu) / jnp.sqrt(var + LN_EPS) * g + b

    src = jnp.concatenate([jnp.dot(x, P["wf"], precision=hp) + P["bf"],
                           jnp.dot(t, P["wt"], precision=hp) + P["bt"]], axis=-1)
    for l in range(NUM_LAYERS):
        q = jnp.dot(src, P["wq"][l], precision=hp) + P["bq"][l]
        k = jnp.dot(src, P["wk"][l], precision=hp) + P["bk"][l]
        v = jnp.dot(src, P["wv"][l], precision=hp) + P["bv"][l]
        qh = q.reshape(B, S, NHEAD, HEAD_DIM).transpose(0, 2, 1, 3)
        kh = k.reshape(B, S, NHEAD, HEAD_DIM).transpose(0, 2, 1, 3)
        vh = v.reshape(B, S, NHEAD, HEAD_DIM).transpose(0, 2, 1, 3)
        s = jnp.einsum("bhqd,bhkd->bhqk", qh, kh, precision=hp) / math.sqrt(HEAD_DIM)
        p = jax.nn.softmax(s, axis=-1)
        o = (jnp.einsum("bhqk,bhkd->bhqd", p, vh, precision=hp)
             .transpose(0, 2, 1, 3).reshape(B, S, D_MODEL))
        attn = jnp.dot(o, P["wo"][l], precision=hp) + P["bo"][l]
        src = ln(src + attn, P["ln1g"][l], P["ln1b"][l])
        ff = jnp.dot(jax.nn.relu(jnp.dot(src, P["w1"][l], precision=hp) + P["b1"][l]),
                     P["w2"][l], precision=hp) + P["b2"][l]
        src = ln(src + ff, P["ln2g"][l], P["ln2b"][l])
    return src.sum(axis=1)


# ---------------------------- parameter init ----------------------------
def init_params(key):
    ks = iter(jax.random.split(key, 24))
    n = lambda shape, sc=0.1: (sc * jax.random.normal(next(ks), shape)).astype(jnp.float32)
    L = NUM_LAYERS
    return {
        "wf": n((D_FEAT_IN, D_FEAT)), "bf": n((D_FEAT,), 0.02),
        "wt": n((D_TIME_IN, D_TIME)), "bt": n((D_TIME,), 0.02),
        "wq": n((L, D_MODEL, D_MODEL)), "bq": n((L, D_MODEL), 0.02),
        "wk": n((L, D_MODEL, D_MODEL)), "bk": n((L, D_MODEL), 0.02),
        "wv": n((L, D_MODEL, D_MODEL)), "bv": n((L, D_MODEL), 0.02),
        "wo": n((L, D_MODEL, D_MODEL)), "bo": n((L, D_MODEL), 0.02),
        "ln1g": jnp.ones((L, D_MODEL), jnp.float32),
        "ln1b": jnp.zeros((L, D_MODEL), jnp.float32),
        "w1": n((L, D_MODEL, DIM_FF)), "b1": n((L, DIM_FF), 0.02),
        "w2": n((L, DIM_FF, D_MODEL)), "b2": n((L, D_MODEL), 0.02),
        "ln2g": jnp.ones((L, D_MODEL), jnp.float32),
        "ln2b": jnp.zeros((L, D_MODEL), jnp.float32),
    }


if __name__ == "__main__":
    key = jax.random.PRNGKey(0)
    kx, kt, kp = jax.random.split(key, 3)
    x = jax.random.normal(kx, (B, S, D_FEAT_IN), dtype=jnp.float32)
    t = jax.random.normal(kt, (B, S, D_TIME_IN), dtype=jnp.float32)
    params = init_params(kp)

    out = jax.block_until_ready(transformer_featurizer(x, t, params))
    assert out.shape == (B, D_MODEL), out.shape

    ref = jax.block_until_ready(reference(x, t, params))
    err = float(jnp.max(jnp.abs(out - ref)))
    assert jnp.allclose(out, ref, atol=1e-3, rtol=1e-3), err
    print("KERNEL_OK")
</pallas_src>

<mosaic_0001>
module attributes {stable_mosaic.version = 11 : i64} {
  func.func @featurizer_kernel(%arg0: memref<16x8xf32, #tpu.memory_space<vmem>>, %arg1: memref<8x32xf32, #tpu.memory_space<vmem>>, %arg2: memref<64x128xf32, #tpu.memory_space<vmem>>, %arg3: memref<32x128xf32, #tpu.memory_space<vmem>>, %arg4: memref<64x64xf32, #tpu.memory_space<vmem>>, %arg5: memref<24x128xf32, #tpu.memory_space<vmem>>, %arg6: memref<2x32xf32, #tpu.memory_space<vmem>>) attributes {dimension_semantics = [], scalar_prefetch = 0 : i64, scratch_operands = 0 : i64, tpu.core_type = #tpu.core_type<tc>} {
    %0 = tpu.iota {dimensions = array<i32: 0>} : vector<64x32xi32>
    %1 = tpu.iota {dimensions = array<i32: 1>} : vector<64x32xi32>
    %c3_i32 = arith.constant 3 : i32
    %2 = vector.broadcast %c3_i32 : i32 to vector<64x32xi32>
    %3 = arith.shrsi %1, %2 : vector<64x32xi32>
    %c4_i32 = arith.constant 4 : i32
    %4 = vector.broadcast %c4_i32 : i32 to vector<64x32xi32>
    %5 = arith.shrsi %0, %4 : vector<64x32xi32>
    %6 = arith.cmpi eq, %3, %5 : vector<64x32xi32>
    %7 = arith.extui %6 : vector<64x32xi1> to vector<64x32xi32>
    %8 = arith.sitofp %7 : vector<64x32xi32> to vector<64x32xf32>
    %9 = tpu.iota {dimensions = array<i32: 0>} : vector<64x64xi32>
    %10 = tpu.iota {dimensions = array<i32: 1>} : vector<64x64xi32>
    %c3_i32_0 = arith.constant 3 : i32
    %11 = vector.broadcast %c3_i32_0 : i32 to vector<64x64xi32>
    %12 = arith.shrsi %9, %11 : vector<64x64xi32>
    %c3_i32_1 = arith.constant 3 : i32
    %13 = vector.broadcast %c3_i32_1 : i32 to vector<64x64xi32>
    %14 = arith.shrsi %10, %13 : vector<64x64xi32>
    %15 = arith.cmpi eq, %12, %14 : vector<64x64xi32>
    %cst = arith.constant 0.000000e+00 : f32
    %cst_2 = arith.constant -1.000000e+09 : f32
    %16 = vector.broadcast %cst : f32 to vector<64x64xf32>
    %17 = vector.broadcast %cst_2 : f32 to vector<64x64xf32>
    %18 = arith.select %15, %16, %17 : vector<64x64xi1>, vector<64x64xf32>
    %19 = tpu.iota {dimensions = array<i32: 0>} : vector<2x16xi32>
    %20 = tpu.iota {dimensions = array<i32: 1>} : vector<2x16xi32>
    %c3_i32_3 = arith.constant 3 : i32
    %21 = vector.broadcast %c3_i32_3 : i32 to vector<2x16xi32>
    %22 = arith.shrsi %20, %21 : vector<2x16xi32>
    %23 = arith.cmpi eq, %22, %19 : vector<2x16xi32>
    %24 = arith.extui %23 : vector<2x16xi1> to vector<2x16xi32>
    %25 = arith.sitofp %24 : vector<2x16xi32> to vector<2x16xf32>
    %c0 = arith.constant 0 : index
    %c0_4 = arith.constant 0 : index
    %26 = vector.load %arg0[%c0, %c0_4] : memref<16x8xf32, #tpu.memory_space<vmem>>, vector<16x8xf32>
    %c0_5 = arith.constant 0 : index
    %c0_6 = arith.constant 0 : index
    %27 = vector.load %arg1[%c0_5, %c0_6] : memref<8x32xf32, #tpu.memory_space<vmem>>, vector<8x32xf32>
    %cst_7 = arith.constant dense<0.000000e+00> : vector<16x32xf32>
    %28 = tpu.matmul %26, %27, %cst_7 {dimension_numbers = #tpu.dot_dimension_numbers<[1], [0], [0], [1], [0, 0, 1, 1], [], []>} : vector<16x8xf32>, vector<8x32xf32>, vector<16x32xf32> -> vector<16x32xf32>
    %c0_8 = arith.constant 0 : index
    %c0_9 = arith.constant 0 : index
    %29 = vector.load %arg5[%c0_8, %c0_9] : memref<24x128xf32, #tpu.memory_space<vmem>>, vector<1x32xf32>
    %30 = vector.broadcast %29 : vector<1x32xf32> to vector<16x32xf32>
    %31 = arith.addf %28, %30 : vector<16x32xf32>
    %c0_10 = arith.constant 0 : index
    %c0_11 = arith.constant 0 : index
    %32 = vector.load %arg2[%c0_10, %c0_11] : memref<64x128xf32, #tpu.memory_space<vmem>>, vector<32x128xf32>
    %c0_12 = arith.constant 0 : index
    %c0_13 = arith.constant 0 : index
    %33 = vector.load %arg3[%c0_12, %c0_13] : memref<32x128xf32, #tpu.memory_space<vmem>>, vector<32x128xf32>
    %34 = vector.extract_strided_slice %33 {offsets = [0, 0], sizes = [32, 64], strides = [1, 1]} : vector<32x128xf32> to vector<32x64xf32>
    %c0_14 = arith.constant 0 : index
    %c0_15 = arith.constant 0 : index
    %35 = vector.load %arg4[%c0_14, %c0_15] : memref<64x64xf32, #tpu.memory_space<vmem>>, vector<64x64xf32>
    %36 = vector.extract_strided_slice %35 {offsets = [0, 0], sizes = [64, 32], strides = [1, 1]} : vector<64x64xf32> to vector<64x32xf32>
    %cst_16 = arith.constant dense<0.000000e+00> : vector<16x128xf32>
    %37 = tpu.matmul %31, %32, %cst_16 {dimension_numbers = #tpu.dot_dimension_numbers<[1], [0], [0], [1], [0, 0, 1, 1], [], []>} : vector<16x32xf32>, vector<32x128xf32>, vector<16x128xf32> -> vector<16x128xf32>
    %c1 = arith.constant 1 : index
    %c0_17 = arith.constant 0 : index
    %38 = vector.load %arg5[%c1, %c0_17] : memref<24x128xf32, #tpu.memory_space<vmem>>, vector<1x128xf32>
    %39 = vector.broadcast %38 : vector<1x128xf32> to vector<16x128xf32>
    %40 = arith.addf %37, %39 : vector<16x128xf32>
    %41 = tpu.concatenate %40, %40, %40, %40 in 0 : vector<16x128xf32>, vector<16x128xf32>, vector<16x128xf32>, vector<16x128xf32> -> vector<64x128xf32>
    %42 = vector.extract_strided_slice %41 {offsets = [0, 0], sizes = [64, 32], strides = [1, 1]} : vector<64x128xf32> to vector<64x32xf32>
    %43 = arith.mulf %42, %8 : vector<64x32xf32>
    %44 = vector.extract_strided_slice %41 {offsets = [0, 32], sizes = [64, 32], strides = [1, 1]} : vector<64x128xf32> to vector<64x32xf32>
    %45 = vector.extract_strided_slice %41 {offsets = [0, 64], sizes = [64, 32], strides = [1, 1]} : vector<64x128xf32> to vector<64x32xf32>
    %46 = arith.mulf %45, %8 : vector<64x32xf32>
    %47 = vector.extract_strided_slice %32 {offsets = [0, 96], sizes = [32, 32], strides = [1, 1]} : vector<32x128xf32> to vector<32x32xf32>
    "tpu.trace_start"() <{level = 10 : i32, message = "rd,cd->rc"}> : () -> ()
    %cst_18 = arith.constant dense<0.000000e+00> : vector<64x64xf32>
    %48 = tpu.matmul %43, %44, %cst_18 {dimension_numbers = #tpu.dot_dimension_numbers<[1], [1], [0], [0], [0, 0, 1, 0], [], []>} : vector<64x32xf32>, vector<64x32xf32>, vector<64x64xf32> -> vector<64x64xf32>
    "tpu.trace_stop"() : () -> ()
    %49 = arith.addf %48, %18 : vector<64x64xf32>
    %cst_19 = arith.constant dense<0xFF800000> : vector<64xf32>
    %50 = vector.multi_reduction <maximumf>, %49, %cst_19 [1] : vector<64x64xf32> to vector<64xf32>
    %51 = vector.shape_cast %50 : vector<64xf32> to vector<64x1xf32>
    %52 = vector.broadcast %51 : vector<64x1xf32> to vector<64x64xf32>
    %53 = arith.subf %49, %52 : vector<64x64xf32>
    %54 = math.exp %53 : vector<64x64xf32>
    %cst_20 = arith.constant dense<0.000000e+00> : vector<64xf32>
    %55 = vector.multi_reduction <add>, %54, %cst_20 [1] : vector<64x64xf32> to vector<64xf32>
    %56 = vector.shape_cast %55 : vector<64xf32> to vector<64x1xf32>
    %57 = tpu.reciprocal %56 : vector<64x1xf32> -> vector<64x1xf32>
    %58 = vector.broadcast %57 : vector<64x1xf32> to vector<64x64xf32>
    %59 = arith.mulf %54, %58 : vector<64x64xf32>
    %cst_21 = arith.constant dense<0.000000e+00> : vector<64x32xf32>
    %60 = tpu.matmul %59, %46, %cst_21 {dimension_numbers = #tpu.dot_dimension_numbers<[1], [0], [0], [1], [0, 0, 1, 1], [], []>} : vector<64x64xf32>, vector<64x32xf32>, vector<64x32xf32> -> vector<64x32xf32>
    %cst_22 = arith.constant dense<0.000000e+00> : vector<64x32xf32>
    %61 = tpu.matmul %60, %47, %cst_22 {dimension_numbers = #tpu.dot_dimension_numbers<[1], [0], [0], [1], [0, 0, 1, 1], [], []>} : vector<64x32xf32>, vector<32x32xf32>, vector<64x32xf32> -> vector<64x32xf32>
    %62 = vector.extract_strided_slice %61 {offsets = [0, 0], sizes = [16, 32], strides = [1, 1]} : vector<64x32xf32> to vector<16x32xf32>
    %63 = vector.extract_strided_slice %61 {offsets = [16, 0], sizes = [16, 32], strides = [1, 1]} : vector<64x32xf32> to vector<16x32xf32>
    %64 = arith.addf %62, %63 : vector<16x32xf32>
    %65 = vector.extract_strided_slice %61 {offsets = [32, 0], sizes = [16, 32], strides = [1, 1]} : vector<64x32xf32> to vector<16x32xf32>
    %66 = arith.addf %64, %65 : vector<16x32xf32>
    %67 = vector.extract_strided_slice %61 {offsets = [48, 0], sizes = [16, 32], strides = [1, 1]} : vector<64x32xf32> to vector<16x32xf32>
    %68 = arith.addf %66, %67 : vector<16x32xf32>
    %c2 = arith.constant 2 : index
    %c0_23 = arith.constant 0 : index
    %69 = vector.load %arg5[%c2, %c0_23] : memref<24x128xf32, #tpu.memory_space<vmem>>, vector<1x32xf32>
    %70 = vector.broadcast %69 : vector<1x32xf32> to vector<16x32xf32>
    %71 = arith.addf %68, %70 : vector<16x32xf32>
    %72 = arith.addf %31, %71 : vector<16x32xf32>
    %c3 = arith.constant 3 : index
    %c0_24 = arith.constant 0 : index
    %73 = vector.load %arg5[%c3, %c0_24] : memref<24x128xf32, #tpu.memory_space<vmem>>, vector<1x32xf32>
    %c4 = arith.constant 4 : index
    %c0_25 = arith.constant 0 : index
    %74 = vector.load %arg5[%c4, %c0_25] : memref<24x128xf32, #tpu.memory_space<vmem>>, vector<1x32xf32>
    %cst_26 = arith.constant dense<0.000000e+00> : vector<16xf32>
    %75 = vector.multi_reduction <add>, %72, %cst_26 [1] : vector<16x32xf32> to vector<16xf32>
    %76 = vector.shape_cast %75 : vector<16xf32> to vector<16x1xf32>
    %cst_27 = arith.constant 3.200000e+01 : f32
    %77 = vector.broadcast %cst_27 : f32 to vector<16x1xf32>
    %78 = arith.divf %76, %77 : vector<16x1xf32>
    %79 = vector.broadcast %78 : vector<16x1xf32> to vector<16x32xf32>
    %80 = arith.subf %72, %79 : vector<16x32xf32>
    %81 = arith.mulf %80, %80 : vector<16x32xf32>
    %cst_28 = arith.constant dense<0.000000e+00> : vector<16xf32>
    %82 = vector.multi_reduction <add>, %81, %cst_28 [1] : vector<16x32xf32> to vector<16xf32>
    %83 = vector.shape_cast %82 : vector<16xf32> to vector<16x1xf32>
    %cst_29 = arith.constant 3.200000e+01 : f32
    %84 = vector.broadcast %cst_29 : f32 to vector<16x1xf32>
    %85 = arith.divf %83, %84 : vector<16x1xf32>
    %cst_30 = arith.constant 9.99999974E-6 : f32
    %86 = vector.broadcast %cst_30 : f32 to vector<16x1xf32>
    %87 = arith.addf %85, %86 : vector<16x1xf32>
    %88 = math.rsqrt %87 : vector<16x1xf32>
    %89 = vector.broadcast %88 : vector<16x1xf32> to vector<16x32xf32>
    %90 = arith.mulf %80, %89 : vector<16x32xf32>
    %91 = vector.broadcast %73 : vector<1x32xf32> to vector<16x32xf32>
    %92 = arith.mulf %90, %91 : vector<16x32xf32>
    %93 = vector.broadcast %74 : vector<1x32xf32> to vector<16x32xf32>
    %94 = arith.addf %92, %93 : vector<16x32xf32>
    %cst_31 = arith.constant dense<0.000000e+00> : vector<16x64xf32>
    %95 = tpu.matmul %94, %34, %cst_31 {dimension_numbers = #tpu.dot_dimension_numbers<[1], [0], [0], [1], [0, 0, 1, 1], [], []>} : vector<16x32xf32>, vector<32x64xf32>, vector<16x64xf32> -> vector<16x64xf32>
    %c5 = arith.constant 5 : index
    %c0_32 = arith.constant 0 : index
    %96 = vector.load %arg5[%c5, %c0_32] : memref<24x128xf32, #tpu.memory_space<vmem>>, vector<1x64xf32>
    %97 = vector.broadcast %96 : vector<1x64xf32> to vector<16x64xf32>
    %98 = arith.addf %95, %97 : vector<16x64xf32>
    %cst_33 = arith.constant 0.000000e+00 : f32
    %99 = vector.broadcast %cst_33 : f32 to vector<16x64xf32>
    %100 = arith.maximumf %98, %99 : vector<16x64xf32>
    %cst_34 = arith.constant dense<0.000000e+00> : vector<16x32xf32>
    %101 = tpu.matmul %100, %36, %cst_34 {dimension_numbers = #tpu.dot_dimension_numbers<[1], [0], [0], [1], [0, 0, 1, 1], [], []>} : vector<16x64xf32>, vector<64x32xf32>, vector<16x32xf32> -> vector<16x32xf32>
    %c6 = arith.constant 6 : index
    %c0_35 = arith.constant 0 : index
    %102 = vector.load %arg5[%c6, %c0_35] : memref<24x128xf32, #tpu.memory_space<vmem>>, vector<1x32xf32>
    %103 = vector.broadcast %102 : vector<1x32xf32> to vector<16x32xf32>
    %104 = arith.addf %101, %103 : vector<16x32xf32>
    %105 = arith.addf %94, %104 : vector<16x32xf32>
    %c7 = arith.constant 7 : index
    %c0_36 = arith.constant 0 : index
    %106 = vector.load %arg5[%c7, %c0_36] : memref<24x128xf32, #tpu.memory_space<vmem>>, vector<1x32xf32>
    %c8 = arith.constant 8 : index
    %c0_37 = arith.constant 0 : index
    %107 = vector.load %arg5[%c8, %c0_37] : memref<24x128xf32, #tpu.memory_space<vmem>>, vector<1x32xf32>
    %cst_38 = arith.constant dense<0.000000e+00> : vector<16xf32>
    %108 = vector.multi_reduction <add>, %105, %cst_38 [1] : vector<16x32xf32> to vector<16xf32>
    %109 = vector.shape_cast %108 : vector<16xf32> to vector<16x1xf32>
    %cst_39 = arith.constant 3.200000e+01 : f32
    %110 = vector.broadcast %cst_39 : f32 to vector<16x1xf32>
    %111 = arith.divf %109, %110 : vector<16x1xf32>
    %112 = vector.broadcast %111 : vector<16x1xf32> to vector<16x32xf32>
    %113 = arith.subf %105, %112 : vector<16x32xf32>
    %114 = arith.mulf %113, %113 : vector<16x32xf32>
    %cst_40 = arith.constant dense<0.000000e+00> : vector<16xf32>
    %115 = vector.multi_reduction <add>, %114, %cst_40 [1] : vector<16x32xf32> to vector<16xf32>
    %116 = vector.shape_cast %115 : vector<16xf32> to vector<16x1xf32>
    %cst_41 = arith.constant 3.200000e+01 : f32
    %117 = vector.broadcast %cst_41 : f32 to vector<16x1xf32>
    %118 = arith.divf %116, %117 : vector<16x1xf32>
    %cst_42 = arith.constant 9.99999974E-6 : f32
    %119 = vector.broadcast %cst_42 : f32 to vector<16x1xf32>
    %120 = arith.addf %118, %119 : vector<16x1xf32>
    %121 = math.rsqrt %120 : vector<16x1xf32>
    %122 = vector.broadcast %121 : vector<16x1xf32> to vector<16x32xf32>
    %123 = arith.mulf %113, %122 : vector<16x32xf32>
    %124 = vector.broadcast %106 : vector<1x32xf32> to vector<16x32xf32>
    %125 = arith.mulf %123, %124 : vector<16x32xf32>
    %126 = vector.broadcast %107 : vector<1x32xf32> to vector<16x32xf32>
    %127 = arith.addf %125, %126 : vector<16x32xf32>
    %c32 = arith.constant 32 : index
    %c0_43 = arith.constant 0 : index
    %128 = vector.load %arg2[%c32, %c0_43] : memref<64x128xf32, #tpu.memory_space<vmem>>, vector<32x128xf32>
    %c0_44 = arith.constant 0 : index
    %c0_45 = arith.constant 0 : index
    %129 = vector.load %arg3[%c0_44, %c0_45] : memref<32x128xf32, #tpu.memory_space<vmem>>, vector<32x128xf32>
    %130 = vector.extract_strided_slice %129 {offsets = [0, 64], sizes = [32, 64], strides = [1, 1]} : vector<32x128xf32> to vector<32x64xf32>
    %c0_46 = arith.constant 0 : index
    %c0_47 = arith.constant 0 : index
    %131 = vector.load %arg4[%c0_46, %c0_47] : memref<64x64xf32, #tpu.memory_space<vmem>>, vector<64x64xf32>
    %132 = vector.extract_strided_slice %131 {offsets = [0, 32], sizes = [64, 32], strides = [1, 1]} : vector<64x64xf32> to vector<64x32xf32>
    %cst_48 = arith.constant dense<0.000000e+00> : vector<16x128xf32>
    %133 = tpu.matmul %127, %128, %cst_48 {dimension_numbers = #tpu.dot_dimension_numbers<[1], [0], [0], [1], [0, 0, 1, 1], [], []>} : vector<16x32xf32>, vector<32x128xf32>, vector<16x128xf32> -> vector<16x128xf32>
    %c9 = arith.constant 9 : index
    %c0_49 = arith.constant 0 : index
    %134 = vector.load %arg5[%c9, %c0_49] : memref<24x128xf32, #tpu.memory_space<vmem>>, vector<1x128xf32>
    %135 = vector.broadcast %134 : vector<1x128xf32> to vector<16x128xf32>
    %136 = arith.addf %133, %135 : vector<16x128xf32>
    %137 = tpu.concatenate %136, %136, %136, %136 in 0 : vector<16x128xf32>, vector<16x128xf32>, vector<16x128xf32>, vector<16x128xf32> -> vector<64x128xf32>
    %138 = vector.extract_strided_slice %137 {offsets = [0, 0], sizes = [64, 32], strides = [1, 1]} : vector<64x128xf32> to vector<64x32xf32>
    %139 = arith.mulf %138, %8 : vector<64x32xf32>
    %140 = vector.extract_strided_slice %137 {offsets = [0, 32], sizes = [64, 32], strides = [1, 1]} : vector<64x128xf32> to vector<64x32xf32>
    %141 = vector.extract_strided_slice %137 {offsets = [0, 64], sizes = [64, 32], strides = [1, 1]} : vector<64x128xf32> to vector<64x32xf32>
    %142 = arith.mulf %141, %8 : vector<64x32xf32>
    %143 = vector.extract_strided_slice %128 {offsets = [0, 96], sizes = [32, 32], strides = [1, 1]} : vector<32x128xf32> to vector<32x32xf32>
    "tpu.trace_start"() <{level = 10 : i32, message = "rd,cd->rc"}> : () -> ()
    %cst_50 = arith.constant dense<0.000000e+00> : vector<64x64xf32>
    %144 = tpu.matmul %139, %140, %cst_50 {dimension_numbers = #tpu.dot_dimension_numbers<[1], [1], [0], [0], [0, 0, 1, 0], [], []>} : vector<64x32xf32>, vector<64x32xf32>, vector<64x64xf32> -> vector<64x64xf32>
    "tpu.trace_stop"() : () -> ()
    %145 = arith.addf %144, %18 : vector<64x64xf32>
    %cst_51 = arith.constant dense<0xFF800000> : vector<64xf32>
    %146 = vector.multi_reduction <maximumf>, %145, %cst_51 [1] : vector<64x64xf32> to vector<64xf32>
    %147 = vector.shape_cast %146 : vector<64xf32> to vector<64x1xf32>
    %148 = vector.broadcast %147 : vector<64x1xf32> to vector<64x64xf32>
    %149 = arith.subf %145, %148 : vector<64x64xf32>
    %150 = math.exp %149 : vector<64x64xf32>
    %cst_52 = arith.constant dense<0.000000e+00> : vector<64xf32>
    %151 = vector.multi_reduction <add>, %150, %cst_52 [1] : vector<64x64xf32> to vector<64xf32>
    %152 = vector.shape_cast %151 : vector<64xf32> to vector<64x1xf32>
    %153 = tpu.reciprocal %152 : vector<64x1xf32> -> vector<64x1xf32>
    %154 = vector.broadcast %153 : vector<64x1xf32> to vector<64x64xf32>
    %155 = arith.mulf %150, %154 : vector<64x64xf32>
    %cst_53 = arith.constant dense<0.000000e+00> : vector<64x32xf32>
    %156 = tpu.matmul %155, %142, %cst_53 {dimension_numbers = #tpu.dot_dimension_numbers<[1], [0], [0], [1], [0, 0, 1, 1], [], []>} : vector<64x64xf32>, vector<64x32xf32>, vector<64x32xf32> -> vector<64x32xf32>
    %cst_54 = arith.constant dense<0.000000e+00> : vector<64x32xf32>
    %157 = tpu.matmul %156, %143, %cst_54 {dimension_numbers = #tpu.dot_dimension_numbers<[1], [0], [0], [1], [0, 0, 1, 1], [], []>} : vector<64x32xf32>, vector<32x32xf32>, vector<64x32xf32> -> vector<64x32xf32>
    %158 = vector.extract_strided_slice %157 {offsets = [0, 0], sizes = [16, 32], strides = [1, 1]} : vector<64x32xf32> to vector<16x32xf32>
    %159 = vector.extract_strided_slice %157 {offsets = [16, 0], sizes = [16, 32], strides = [1, 1]} : vector<64x32xf32> to vector<16x32xf32>
    %160 = arith.addf %158, %159 : vector<16x32xf32>
    %161 = vector.extract_strided_slice %157 {offsets = [32, 0], sizes = [16, 32], strides = [1, 1]} : vector<64x32xf32> to vector<16x32xf32>
    %162 = arith.addf %160, %161 : vector<16x32xf32>
    %163 = vector.extract_strided_slice %157 {offsets = [48, 0], sizes = [16, 32], strides = [1, 1]} : vector<64x32xf32> to vector<16x32xf32>
    %164 = arith.addf %162, %163 : vector<16x32xf32>
    %c10 = arith.constant 10 : index
    %c0_55 = arith.constant 0 : index
    %165 = vector.load %arg5[%c10, %c0_55] : memref<24x128xf32, #tpu.memory_space<vmem>>, vector<1x32xf32>
    %166 = vector.broadcast %165 : vector<1x32xf32> to vector<16x32xf32>
    %167 = arith.addf %164, %166 : vector<16x32xf32>
    %168 = arith.addf %127, %167 : vector<16x32xf32>
    %c11 = arith.constant 11 : index
    %c0_56 = arith.constant 0 : index
    %169 = vector.load %arg5[%c11, %c0_56] : memref<24x128xf32, #tpu.memory_space<vmem>>, vector<1x32xf32>
    %c12 = arith.constant 12 : index
    %c0_57 = arith.constant 0 : index
    %170 = vector.load %arg5[%c12, %c0_57] : memref<24x128xf32, #tpu.memory_space<vmem>>, vector<1x32xf32>
    %cst_58 = arith.constant dense<0.000000e+00> : vector<16xf32>
    %171 = vector.multi_reduction <add>, %168, %cst_58 [1] : vector<16x32xf32> to vector<16xf32>
    %172 = vector.shape_cast %171 : vector<16xf32> to vector<16x1xf32>
    %cst_59 = arith.constant 3.200000e+01 : f32
    %173 = vector.broadcast %cst_59 : f32 to vector<16x1xf32>
    %174 = arith.divf %172, %173 : vector<16x1xf32>
    %175 = vector.broadcast %174 : vector<16x1xf32> to vector<16x32xf32>
    %176 = arith.subf %168, %175 : vector<16x32xf32>
    %177 = arith.mulf %176, %176 : vector<16x32xf32>
    %cst_60 = arith.constant dense<0.000000e+00> : vector<16xf32>
    %178 = vector.multi_reduction <add>, %177, %cst_60 [1] : vector<16x32xf32> to vector<16xf32>
    %179 = vector.shape_cast %178 : vector<16xf32> to vector<16x1xf32>
    %cst_61 = arith.constant 3.200000e+01 : f32
    %180 = vector.broadcast %cst_61 : f32 to vector<16x1xf32>
    %181 = arith.divf %179, %180 : vector<16x1xf32>
    %cst_62 = arith.constant 9.99999974E-6 : f32
    %182 = vector.broadcast %cst_62 : f32 to vector<16x1xf32>
    %183 = arith.addf %181, %182 : vector<16x1xf32>
    %184 = math.rsqrt %183 : vector<16x1xf32>
    %185 = vector.broadcast %184 : vector<16x1xf32> to vector<16x32xf32>
    %186 = arith.mulf %176, %185 : vector<16x32xf32>
    %187 = vector.broadcast %169 : vector<1x32xf32> to vector<16x32xf32>
    %188 = arith.mulf %186, %187 : vector<16x32xf32>
    %189 = vector.broadcast %170 : vector<1x32xf32> to vector<16x32xf32>
    %190 = arith.addf %188, %189 : vector<16x32xf32>
    %cst_63 = arith.constant dense<0.000000e+00> : vector<16x64xf32>
    %191 = tpu.matmul %190, %130, %cst_63 {dimension_numbers = #tpu.dot_dimension_numbers<[1], [0], [0], [1], [0, 0, 1, 1], [], []>} : vector<16x32xf32>, vector<32x64xf32>, vector<16x64xf32> -> vector<16x64xf32>
    %c13 = arith.constant 13 : index
    %c0_64 = arith.constant 0 : index
    %192 = vector.load %arg5[%c13, %c0_64] : memref<24x128xf32, #tpu.memory_space<vmem>>, vector<1x64xf32>
    %193 = vector.broadcast %192 : vector<1x64xf32> to vector<16x64xf32>
    %194 = arith.addf %191, %193 : vector<16x64xf32>
    %cst_65 = arith.constant 0.000000e+00 : f32
    %195 = vector.broadcast %cst_65 : f32 to vector<16x64xf32>
    %196 = arith.maximumf %194, %195 : vector<16x64xf32>
    %cst_66 = arith.constant dense<0.000000e+00> : vector<16x32xf32>
    %197 = tpu.matmul %196, %132, %cst_66 {dimension_numbers = #tpu.dot_dimension_numbers<[1], [0], [0], [1], [0, 0, 1, 1], [], []>} : vector<16x64xf32>, vector<64x32xf32>, vector<16x32xf32> -> vector<16x32xf32>
    %c14 = arith.constant 14 : index
    %c0_67 = arith.constant 0 : index
    %198 = vector.load %arg5[%c14, %c0_67] : memref<24x128xf32, #tpu.memory_space<vmem>>, vector<1x32xf32>
    %199 = vector.broadcast %198 : vector<1x32xf32> to vector<16x32xf32>
    %200 = arith.addf %197, %199 : vector<16x32xf32>
    %201 = arith.addf %190, %200 : vector<16x32xf32>
    %c15 = arith.constant 15 : index
    %c0_68 = arith.constant 0 : index
    %202 = vector.load %arg5[%c15, %c0_68] : memref<24x128xf32, #tpu.memory_space<vmem>>, vector<1x32xf32>
    %c16 = arith.constant 16 : index
    %c0_69 = arith.constant 0 : index
    %203 = vector.load %arg5[%c16, %c0_69] : memref<24x128xf32, #tpu.memory_space<vmem>>, vector<1x32xf32>
    %cst_70 = arith.constant dense<0.000000e+00> : vector<16xf32>
    %204 = vector.multi_reduction <add>, %201, %cst_70 [1] : vector<16x32xf32> to vector<16xf32>
    %205 = vector.shape_cast %204 : vector<16xf32> to vector<16x1xf32>
    %cst_71 = arith.constant 3.200000e+01 : f32
    %206 = vector.broadcast %cst_71 : f32 to vector<16x1xf32>
    %207 = arith.divf %205, %206 : vector<16x1xf32>
    %208 = vector.broadcast %207 : vector<16x1xf32> to vector<16x32xf32>
    %209 = arith.subf %201, %208 : vector<16x32xf32>
    %210 = arith.mulf %209, %209 : vector<16x32xf32>
    %cst_72 = arith.constant dense<0.000000e+00> : vector<16xf32>
    %211 = vector.multi_reduction <add>, %210, %cst_72 [1] : vector<16x32xf32> to vector<16xf32>
    %212 = vector.shape_cast %211 : vector<16xf32> to vector<16x1xf32>
    %cst_73 = arith.constant 3.200000e+01 : f32
    %213 = vector.broadcast %cst_73 : f32 to vector<16x1xf32>
    %214 = arith.divf %212, %213 : vector<16x1xf32>
    %cst_74 = arith.constant 9.99999974E-6 : f32
    %215 = vector.broadcast %cst_74 : f32 to vector<16x1xf32>
    %216 = arith.addf %214, %215 : vector<16x1xf32>
    %217 = math.rsqrt %216 : vector<16x1xf32>
    %218 = vector.broadcast %217 : vector<16x1xf32> to vector<16x32xf32>
    %219 = arith.mulf %209, %218 : vector<16x32xf32>
    %220 = vector.broadcast %202 : vector<1x32xf32> to vector<16x32xf32>
    %221 = arith.mulf %219, %220 : vector<16x32xf32>
    %222 = vector.broadcast %203 : vector<1x32xf32> to vector<16x32xf32>
    %223 = arith.addf %221, %222 : vector<16x32xf32>
    %cst_75 = arith.constant dense<0.000000e+00> : vector<2x32xf32>
    %224 = tpu.matmul %25, %223, %cst_75 {dimension_numbers = #tpu.dot_dimension_numbers<[1], [0], [0], [1], [0, 0, 1, 1], [], []>} : vector<2x16xf32>, vector<16x32xf32>, vector<2x32xf32> -> vector<2x32xf32>
    %c0_76 = arith.constant 0 : index
    %c0_77 = arith.constant 0 : index
    %225 = vector.load %arg6[%c0_76, %c0_77] : memref<2x32xf32, #tpu.memory_space<vmem>>, vector<2x32xf32>
    tpu.vector_store %arg6[%c0_76, %c0_77], %224 {strides = array<i32>} : memref<2x32xf32, #tpu.memory_space<vmem>>, vector<2x32xf32>,
    return
  }
}

</mosaic_0001>

<llo_original>
// kernel: tpu_custom_call.1
$region0: #{tpu_custom_call.1}
  #allocation0 [shape = 'u32[]', space=smem, size = 0x4, offset = 0x4, fixed_abs, tag = 'smem constant byte address 0x4 - core index']
  #allocation1 [shape = 'u32[144,128]{1,0:T(1,128)}', space=vmem, size = 0x12000, scoped, tag = 'internal scratch']
  %s0 = inlined_call_operand.vmem [shape: f32[16,8], index: 0, kind: input, shape index: {}]
  %s1 = inlined_call_operand.hbm [shape: f32[8,32], index: 1, kind: input, shape index: {}]
  %s2 = inlined_call_operand.hbm [shape: f32[64,128], index: 2, kind: input, shape index: {}]
  %s3 = inlined_call_operand.vmem [shape: f32[32,128], index: 3, kind: input, shape index: {}]
  %s4 = inlined_call_operand.hbm [shape: f32[64,64], index: 4, kind: input, shape index: {}]
  %s5 = inlined_call_operand.hbm [shape: f32[24,128], index: 5, kind: input, shape index: {}]
  %s6 = inlined_call_operand.hbm [shape: f32[2,32], index: 6, kind: output, shape index: {}]
  %s7 = sld [smem:[#allocation0]]
  $region50: #{tpu_custom_call.1} parent=0
    _
  %s9 = ssub.s32 1, %s7
  %s10 = scalar_select 0, %s9, %s7
  $region1: #{tpu_custom_call.1} parent=0
    #allocation2 [shape = 'u8[4096]{0}', space=vmem, size = 0x1000, scoped, tag = 'input window, operand 1, single buffered']
    #allocation3 [shape = 's32[1]{0}', space=sflag, size = 0x4, scoped, tag = 'scoped memory for tpu_custom_call.1']
    #allocation4 [shape = 's32[1]{0}', space=sflag, size = 0x4, scoped, tag = 'scoped memory for tpu_custom_call.1']
    #allocation5 [shape = 'u8[32768]{0}', space=vmem, size = 0x8000, scoped, tag = 'input window, operand 2, single buffered']
    #allocation6 [shape = 's32[1]{0}', space=sflag, size = 0x4, scoped, tag = 'scoped memory for tpu_custom_call.1']
    #allocation7 [shape = 'u8[32768]{0}', space=vmem, size = 0x8000, scoped, tag = 'input window, operand 4, single buffered']
    #allocation8 [shape = 'u8[12288]{0}', space=vmem, size = 0x3000, scoped, tag = 'input window, operand 5, single buffered']
    #allocation9 [shape = 's32[1]{0}', space=sflag, size = 0x4, scoped, tag = 'scoped memory for tpu_custom_call.1']
    #allocation10 [shape = 'u8[1024]{0}', space=vmem, size = 0x400, scoped, tag = 'output window, operand 0, single buffered']
    %11 = vsyncpa [#allocation3], 0
    %12 = vsyncpa [#allocation6], 0
    %13 = vsyncpa [#allocation9], 0
    %14 = vsyncpa [#allocation4], 0
    // Predicated region
    $region2: #{tpu_custom_call.1} parent=1 // pred_check
      _
    $region3: #{tpu_custom_call.1} parent=1 // pred_check_branch
      %16 = sbr.rel (0) target = $region5
    $region4: #{tpu_custom_call.1} parent=1 // pred_region
      _
    $region5: #{tpu_custom_call.1} parent=1 // pred_fallthru
      _
    // Predicated region
    $region6: #{tpu_custom_call.1} parent=1 // pred_check
      _
    $region7: #{tpu_custom_call.1} parent=1 // pred_check_branch
      %18 = sbr.rel (0) target = $region9
    $region8: #{tpu_custom_call.1} parent=1 // pred_region
      %s20 = ssub.s32 128, 128
      %21 = vsyncadd [#allocation3], %s20
      %s23 = sshll.u32 [#allocation2], 4
      %s24 = int_to_ptr.vmem [resolvable:$true] %s23
      %26 = dma.hbm_to_vmem [thread:$0]  %s1, 128, %s24, [#allocation3]
    $region9: #{tpu_custom_call.1} parent=1 // pred_fallthru
      _
    // Predicated region
    $region10: #{tpu_custom_call.1} parent=1 // pred_check
      _
    $region11: #{tpu_custom_call.1} parent=1 // pred_check_branch
      %28 = sbr.rel (0) target = $region13
    $region12: #{tpu_custom_call.1} parent=1 // pred_region
      %s30 = ssub.s32 1024, 1024
      %31 = vsyncadd [#allocation6], %s30
      %s32 = sshll.u32 [#allocation5], 4
      %s33 = int_to_ptr.vmem [resolvable:$true] %s32
      %38 = dma.hbm_to_vmem [thread:$0]  %s2, 1024, %s33, [#allocation6], 128, 128, 8
    $region13: #{tpu_custom_call.1} parent=1 // pred_fallthru
      _
    // Predicated region
    $region14: #{tpu_custom_call.1} parent=1 // pred_check
      _
    $region15: #{tpu_custom_call.1} parent=1 // pred_check_branch
      %40 = sbr.rel (0) target = $region17
    $region16: #{tpu_custom_call.1} parent=1 // pred_region
      _
    $region17: #{tpu_custom_call.1} parent=1 // pred_fallthru
      _
    // Predicated region
    $region18: #{tpu_custom_call.1} parent=1 // pred_check
      _
    $region19: #{tpu_custom_call.1} parent=1 // pred_check_branch
      %42 = sbr.rel (0) target = $region21
    $region20: #{tpu_custom_call.1} parent=1 // pred_region
      %s44 = ssub.s32 1024, 1024
      %45 = vsyncadd [#allocation6], %s44
      %s46 = sshll.u32 [#allocation7], 4
      %s47 = int_to_ptr.vmem [resolvable:$true] %s46
      %52 = dma.hbm_to_vmem [thread:$0]  %s4, 1024, %s47, [#allocation6], 128, 128, 8
    $region21: #{tpu_custom_call.1} parent=1 // pred_fallthru
      _
    // Predicated region
    $region22: #{tpu_custom_call.1} parent=1 // pred_check
      _
    $region23: #{tpu_custom_call.1} parent=1 // pred_check_branch
      %54 = sbr.rel (0) target = $region25
    $region24: #{tpu_custom_call.1} parent=1 // pred_region
      %s56 = ssub.s32 384, 384
      %57 = vsyncadd [#allocation9], %s56
      %s58 = sshll.u32 [#allocation8], 4
      %s59 = int_to_ptr.vmem [resolvable:$true] %s58
      %64 = dma.hbm_to_vmem [thread:$0]  %s5, 384, %s59, [#allocation9], 128, 128, 8
    $region25: #{tpu_custom_call.1} parent=1 // pred_fallthru
      _
    // Predicated region
    $region26: #{tpu_custom_call.1} parent=1 // pred_check
      _
    $region27: #{tpu_custom_call.1} parent=1 // pred_check_branch
      %66 = sbr.rel (0) target = $region29
    $region28: #{tpu_custom_call.1} parent=1 // pred_region
      %67 = dma.done [#allocation3], 128
    $region29: #{tpu_custom_call.1} parent=1 // pred_fallthru
      _
    // Predicated region
    $region30: #{tpu_custom_call.1} parent=1 // pred_check
      _
    $region31: #{tpu_custom_call.1} parent=1 // pred_check_branch
      %69 = sbr.rel (0) target = $region33
    $region32: #{tpu_custom_call.1} parent=1 // pred_region
      %70 = dma.done [#allocation6], 1024
    $region33: #{tpu_custom_call.1} parent=1 // pred_fallthru
      _
    // Predicated region
    $region34: #{tpu_custom_call.1} parent=1 // pred_check
      _
    $region35: #{tpu_custom_call.1} parent=1 // pred_check_branch
      %72 = sbr.rel (0) target = $region37
    $region36: #{tpu_custom_call.1} parent=1 // pred_region
      %73 = dma.done [#allocation6], 1024
    $region37: #{tpu_custom_call.1} parent=1 // pred_fallthru
      _
    // Predicated region
    $region38: #{tpu_custom_call.1} parent=1 // pred_check
      _
    $region39: #{tpu_custom_call.1} parent=1 // pred_check_branch
      %75 = sbr.rel (0) target = $region41
    $region40: #{tpu_custom_call.1} parent=1 // pred_region
      %76 = dma.done [#allocation9], 384
    $region41: #{tpu_custom_call.1} parent=1 // pred_fallthru
      _
    %v77 = vlaneseq
    %v78 = vshrl.u32 %v77, 7
    %v79 = vadd.s32 %v78, 8
    %v80 = vadd.s32 %v78, 16
    %v81 = vadd.s32 %v78, 24
    %v82 = vadd.s32 %v78, 32
    %v83 = vadd.s32 %v78, 40
    %v84 = vadd.s32 %v78, 48
    %v85 = vadd.s32 %v78, 56
    %v86 = vlaneseq
    %v87 = vand.u32 %v86, 127
    %v88 = vshra.s32 %v87, 3
    %v89 = vshra.s32 %v78, 4
    %v90 = vshra.s32 %v79, 4
    %v91 = vshra.s32 %v80, 4
    %v92 = vshra.s32 %v81, 4
    %v93 = vshra.s32 %v82, 4
    %v94 = vshra.s32 %v83, 4
    %v95 = vshra.s32 %v84, 4
    %v96 = vshra.s32 %v85, 4
    %vm97 = vcmp.eq.s32.totalorder %v88, %v89
    %vm98 = vcmp.eq.s32.totalorder %v88, %v90
    %vm99 = vcmp.eq.s32.totalorder %v88, %v91
    %vm100 = vcmp.eq.s32.totalorder %v88, %v92
    %vm101 = vcmp.eq.s32.totalorder %v88, %v93
    %vm102 = vcmp.eq.s32.totalorder %v88, %v94
    %vm103 = vcmp.eq.s32.totalorder %v88, %v95
    %vm104 = vcmp.eq.s32.totalorder %v88, %v96
    %v105 = vsel %vm97, 1, 0
    %v106 = vsel %vm98, 1, 0
    %v107 = vsel %vm99, 1, 0
    %v108 = vsel %vm100, 1, 0
    %v109 = vsel %vm101, 1, 0
    %v110 = vsel %vm102, 1, 0
    %v111 = vsel %vm103, 1, 0
    %v112 = vsel %vm104, 1, 0
    %v113 = vcvt.s32.f32 %v105
    %v114 = vcvt.s32.f32 %v106
    %v115 = vcvt.s32.f32 %v107
    %v116 = vcvt.s32.f32 %v108
    %v117 = vcvt.s32.f32 %v109
    %v118 = vcvt.s32.f32 %v110
    %v119 = vcvt.s32.f32 %v111
    %v120 = vcvt.s32.f32 %v112
    %v121 = vshra.s32 %v78, 3
    %v122 = vshra.s32 %v79, 3
    %v123 = vshra.s32 %v80, 3
    %v124 = vshra.s32 %v81, 3
    %v125 = vshra.s32 %v82, 3
    %v126 = vshra.s32 %v83, 3
    %v127 = vshra.s32 %v84, 3
    %v128 = vshra.s32 %v85, 3
    %vm129 = vcmp.eq.s32.totalorder %v121, %v88
    %vm130 = vcmp.eq.s32.totalorder %v122, %v88
    %vm131 = vcmp.eq.s32.totalorder %v123, %v88
    %vm132 = vcmp.eq.s32.totalorder %v124, %v88
    %vm133 = vcmp.eq.s32.totalorder %v125, %v88
    %vm134 = vcmp.eq.s32.totalorder %v126, %v88
    %vm135 = vcmp.eq.s32.totalorder %v127, %v88
    %vm136 = vcmp.eq.s32.totalorder %v128, %v88
    %v137 = vsel %vm129, 0.0, -1e+09
    %v138 = vsel %vm130, 0.0, -1e+09
    %v139 = vsel %vm131, 0.0, -1e+09
    %v140 = vsel %vm132, 0.0, -1e+09
    %v141 = vsel %vm133, 0.0, -1e+09
    %v142 = vsel %vm134, 0.0, -1e+09
    %v143 = vsel %vm135, 0.0, -1e+09
    %v144 = vsel %vm136, 0.0, -1e+09
    %vm145 = vcmp.eq.s32.totalorder %v88, %v78
    %v146 = vsel %vm145, 1, 0
    %v147 = vcvt.s32.f32 %v146
    %v148 = vld [vmem:[%s0] sm:$0xff]
    %v149 = vld [vmem:[%s0 + $0x8] sm:$0xff]
    %v150 = vld [vmem:[#allocation2] sm:$0xff]
    %v151 = vld [vmem:[#allocation8] sm:$0x1]
    %v152 = vlaneseq
    %v153 = vshrl.u32 %v152, 7
    %v154 = vsub.s32 0, %v153
    %v155 = vrot.slane %v151, %v154
    %vm156 = vcmask 64512
    %v158 = vsel %vm156, %v148, 0
    %v161 = vsel %vm156, %v149, 0
    %163 = vmatprep.subr.mxu0 0.0
    %164 = vmatpush1.msra.mxu0 %v150
    %165 = vmatprep.subr.mxu0 0.0
    %166 = vmatpush1.msra.mxu0 0.0
    %167 = vmatprep.subr.mxu0 0.0
    %168 = vmatpush1.msra.mxu0 0.0
    %169 = vmatprep.subr.mxu0 0.0
    %170 = vmatpush1.msra.mxu0 0.0
    %171 = vmatprep.subr.mxu0 0.0
    %172 = vmatpush1.msra.mxu0 0.0
    %173 = vmatprep.subr.mxu0 0.0
    %174 = vmatpush1.msra.mxu0 0.0
    %175 = vmatprep.subr.mxu0 0.0
    %176 = vmatpush1.msra.mxu0 0.0
    %177 = vmatprep.subr.mxu0 0.0
    %178 = vmatpush1.msra.mxu0 0.0
    %179 = vmatprep.subr.mxu0 0.0
    %180 = vmatpush1.msra.mxu0 0.0
    %181 = vmatprep.subr.mxu0 0.0
    %182 = vmatpush1.msra.mxu0 0.0
    %183 = vmatprep.subr.mxu0 0.0
    %184 = vmatpush1.msra.mxu0 0.0
    %185 = vmatprep.subr.mxu0 0.0
    %186 = vmatpush1.msra.mxu0 0.0
    %187 = vmatprep.subr.mxu0 0.0
    %188 = vmatpush1.msra.mxu0 0.0
    %189 = vmatprep.subr.mxu0 0.0
    %190 = vmatpush1.msra.mxu0 0.0
    %191 = vmatprep.subr.mxu0 0.0
    %192 = vmatpush1.msra.mxu0 0.0
    %193 = vmatprep.subr.mxu0 0.0
    %194 = vmatpush1.msra.mxu0 0.0
    %195 = vmatprep.subr.mxu0 0.0
    %196 = vmatpush1.msra.mxu0 0.0
    %197 = vmatprep.subr.mxu0 0.0
    %198 = vmatpush1.msra.mxu0 0.0
    %199 = vmatprep.subr.mxu0 0.0
    %200 = vmatpush1.msra.mxu0 0.0
    %201 = vmatprep.subr.mxu0 0.0
    %202 = vmatpush1.msra.mxu0 0.0
    %203 = vmatprep.subr.mxu0 0.0
    %204 = vmatpush1.msra.mxu0 0.0
    %205 = vmatprep.subr.mxu0 0.0
    %206 = vmatpush1.msra.mxu0 0.0
    %207 = vmatprep.subr.mxu0 0.0
    %208 = vmatpush1.msra.mxu0 0.0
    %209 = vmatprep.subr.mxu0 0.0
    %210 = vmatpush1.msra.mxu0 0.0
    %211 = vmatprep.subr.mxu0 0.0
    %212 = vmatpush1.msra.mxu0 0.0
    %213 = vmatprep.subr.mxu0 0.0
    %214 = vmatpush1.msra.mxu0 0.0
    %215 = vmatprep.subr.mxu0 0.0
    %216 = vmatpush1.msra.mxu0 0.0
    %217 = vmatprep.subr.mxu0 0.0
    %218 = vmatpush1.msra.mxu0 0.0
    %219 = vmatprep.subr.mxu0 0.0
    %220 = vmatpush1.msra.mxu0 0.0
    %221 = vmatprep.subr.mxu0 0.0
    %222 = vmatpush1.msra.mxu0 0.0
    %223 = vmatprep.subr.mxu0 0.0
    %224 = vmatpush1.msra.mxu0 0.0
    %225 = vmatprep.subr.mxu0 0.0
    %226 = vmatpush1.msra.mxu0 0.0
    %227 = vmatprep.mubr.f32.mxu0 0.0
    %228 = vmatmul.mubr.f32.gmra.mrb[0].mxu0 %v158
    %v229 = vpop.f32.mrb[0].mxu0
    %v230 = vadd.f32 %v155, %v229
    %v231 = vpop.f32.mrb[0].mxu0
    %232 = vmatprep.mubr.f32.mxu0 0.0
    %233 = vmatmul.mubr.f32.gmra.mrb[0].mxu0 %v161
    %v234 = vpop.f32.mrb[0].mxu0
    %v235 = vadd.f32 %v155, %v234
    %v236 = vpop.f32.mrb[0].mxu0
    %237 = vdwg.mxu0
    %v238 = vld [vmem:[#allocation5] sm:$0xff]
    %v239 = vld [vmem:[#allocation5 + $0x8] sm:$0xff]
    %v240 = vld [vmem:[#allocation5 + $0x10] sm:$0xff]
    %v241 = vld [vmem:[#allocation5 + $0x18] sm:$0xff]
    %v242 = vld [vmem:[%s3] sm:$0xff]
    %v243 = vld [vmem:[%s3 + $0x8] sm:$0xff]
    %v244 = vld [vmem:[%s3 + $0x10] sm:$0xff]
    %v245 = vld [vmem:[%s3 + $0x18] sm:$0xff]
    %v246 = vld [vmem:[#allocation7] sm:$0xff]
    %v247 = vld [vmem:[#allocation7 + $0x8] sm:$0xff]
    %v248 = vld [vmem:[#allocation7 + $0x10] sm:$0xff]
    %v249 = vld [vmem:[#allocation7 + $0x18] sm:$0xff]
    %v250 = vld [vmem:[#allocation7 + $0x20] sm:$0xff]
    %v251 = vld [vmem:[#allocation7 + $0x28] sm:$0xff]
    %v252 = vld [vmem:[#allocation7 + $0x30] sm:$0xff]
    %v253 = vld [vmem:[#allocation7 + $0x38] sm:$0xff]
    %v254 = vld [vmem:[#allocation8 + $0x1] sm:$0x1]
    %v255 = vlaneseq
    %v256 = vshrl.u32 %v255, 7
    %v257 = vsub.s32 0, %v256
    %v258 = vrot.slane %v254, %v257
    %vm259 = vcmask 261120
    %v261 = vsel %vm259, %v230, 0
    %v264 = vsel %vm259, %v235, 0
    %266 = vmatprep.subr.mxu0 0.0
    %267 = vmatpush1.msra.mxu0 %v238
    %268 = vmatprep.subr.mxu0 0.0
    %269 = vmatpush1.msra.mxu0 %v239
    %270 = vmatprep.subr.mxu0 0.0
    %271 = vmatpush1.msra.mxu0 %v240
    %272 = vmatprep.subr.mxu0 0.0
    %273 = vmatpush1.msra.mxu0 %v241
    %274 = vmatprep.subr.mxu0 0.0
    %275 = vmatpush1.msra.mxu0 0.0
    %276 = vmatprep.subr.mxu0 0.0
    %277 = vmatpush1.msra.mxu0 0.0
    %278 = vmatprep.subr.mxu0 0.0
    %279 = vmatpush1.msra.mxu0 0.0
    %280 = vmatprep.subr.mxu0 0.0
    %281 = vmatpush1.msra.mxu0 0.0
    %282 = vmatprep.subr.mxu0 0.0
    %283 = vmatpush1.msra.mxu0 0.0
    %284 = vmatprep.subr.mxu0 0.0
    %285 = vmatpush1.msra.mxu0 0.0
    %286 = vmatprep.subr.mxu0 0.0
    %287 = vmatpush1.msra.mxu0 0.0
    %288 = vmatprep.subr.mxu0 0.0
    %289 = vmatpush1.msra.mxu0 0.0
    %290 = vmatprep.subr.mxu0 0.0
    %291 = vmatpush1.msra.mxu0 0.0
    %292 = vmatprep.subr.mxu0 0.0
    %293 = vmatpush1.msra.mxu0 0.0
    %294 = vmatprep.subr.mxu0 0.0
    %295 = vmatpush1.msra.mxu0 0.0
    %296 = vmatprep.subr.mxu0 0.0
    %297 = vmatpush1.msra.mxu0 0.0
    %298 = vmatprep.subr.mxu0 0.0
    %299 = vmatpush1.msra.mxu0 0.0
    %300 = vmatprep.subr.mxu0 0.0
    %301 = vmatpush1.msra.mxu0 0.0
    %302 = vmatprep.subr.mxu0 0.0
    %303 = vmatpush1.msra.mxu0 0.0
    %304 = vmatprep.subr.mxu0 0.0
    %305 = vmatpush1.msra.mxu0 0.0
    %306 = vmatprep.subr.mxu0 0.0
    %307 = vmatpush1.msra.mxu0 0.0
    %308 = vmatprep.subr.mxu0 0.0
    %309 = vmatpush1.msra.mxu0 0.0
    %310 = vmatprep.subr.mxu0 0.0
    %311 = vmatpush1.msra.mxu0 0.0
    %312 = vmatprep.subr.mxu0 0.0
    %313 = vmatpush1.msra.mxu0 0.0
    %314 = vmatprep.subr.mxu0 0.0
    %315 = vmatpush1.msra.mxu0 0.0
    %316 = vmatprep.subr.mxu0 0.0
    %317 = vmatpush1.msra.mxu0 0.0
    %318 = vmatprep.subr.mxu0 0.0
    %319 = vmatpush1.msra.mxu0 0.0
    %320 = vmatprep.subr.mxu0 0.0
    %321 = vmatpush1.msra.mxu0 0.0
    %322 = vmatprep.subr.mxu0 0.0
    %323 = vmatpush1.msra.mxu0 0.0
    %324 = vmatprep.subr.mxu0 0.0
    %325 = vmatpush1.msra.mxu0 0.0
    %326 = vmatprep.subr.mxu0 0.0
    %327 = vmatpush1.msra.mxu0 0.0
    %328 = vmatprep.subr.mxu0 0.0
    %329 = vmatpush1.msra.mxu0 0.0
    %330 = vmatprep.mubr.f32.mxu0 0.0
    %331 = vmatmul.mubr.f32.gmra.mrb[0].mxu0 %v261
    %v332 = vpop.f32.mrb[0].mxu0
    %v333 = vadd.f32 %v258, %v332
    %v334 = vpop.f32.mrb[0].mxu0
    %335 = vmatprep.mubr.f32.mxu0 0.0
    %336 = vmatmul.mubr.f32.gmra.mrb[0].mxu0 %v264
    %v337 = vpop.f32.mrb[0].mxu0
    %v338 = vadd.f32 %v258, %v337
    %v339 = vpop.f32.mrb[0].mxu0
    %340 = vdwg.mxu0
    %v341 = vmul.f32 %v333, %v113
    %v342 = vmul.f32 %v338, %v114
    %v343 = vmul.f32 %v333, %v115
    %v344 = vmul.f32 %v338, %v116
    %v345 = vmul.f32 %v333, %v117
    %v346 = vmul.f32 %v338, %v118
    %v347 = vmul.f32 %v333, %v119
    %v348 = vmul.f32 %v338, %v120
    %357 = vrot.lane.b32.xlu0 %v113, 64
    %v358 = vpop.permute.xlu0 %357
    %359 = vrot.lane.b32.xlu0 %v114, 64
    %v360 = vpop.permute.xlu0 %359
    %361 = vrot.lane.b32.xlu0 %v115, 64
    %v362 = vpop.permute.xlu0 %361
    %363 = vrot.lane.b32.xlu0 %v116, 64
    %v364 = vpop.permute.xlu0 %363
    %365 = vrot.lane.b32.xlu0 %v117, 64
    %v366 = vpop.permute.xlu0 %365
    %367 = vrot.lane.b32.xlu0 %v118, 64
    %v368 = vpop.permute.xlu0 %367
    %369 = vrot.lane.b32.xlu0 %v119, 64
    %v370 = vpop.permute.xlu0 %369
    %371 = vrot.lane.b32.xlu0 %v120, 64
    %v372 = vpop.permute.xlu0 %371
    %v381 = vmul.f32 %v333, %v358
    %v382 = vmul.f32 %v338, %v360
    %v383 = vmul.f32 %v333, %v362
    %v384 = vmul.f32 %v338, %v364
    %v385 = vmul.f32 %v333, %v366
    %v386 = vmul.f32 %v338, %v368
    %v387 = vmul.f32 %v333, %v370
    %v388 = vmul.f32 %v338, %v372
    %391 = vrot.lane.b32.xlu0 %v333, 96
    %v392 = vpop.permute.xlu0 %391
    %393 = vrot.lane.b32.xlu0 %v338, 96
    %v394 = vpop.permute.xlu0 %393
    %v396 = vsel %vm259, %v341, 0
    %v399 = vsel %vm259, %v342, 0
    %v402 = vsel %vm259, %v343, 0
    %v405 = vsel %vm259, %v344, 0
    %v408 = vsel %vm259, %v345, 0
    %v411 = vsel %vm259, %v346, 0
    %v414 = vsel %vm259, %v347, 0
    %v417 = vsel %vm259, %v348, 0
    %v419 = vsel %vm259, %v392, 0
    %v421 = vsel %vm259, %v394, 0
    %423 = vmatprep.subr.mxu0 0.0
    %424 = vmatpush1.xpose.msra.mxu0 %v419
    %425 = vmatprep.subr.mxu0 0.0
    %426 = vmatpush1.xpose.msra.mxu0 %v421
    %427 = vmatprep.subr.mxu0 0.0
    %428 = vmatpush1.xpose.msra.mxu0 %v419
    %429 = vmatprep.subr.mxu0 0.0
    %430 = vmatpush1.xpose.msra.mxu0 %v421
    %431 = vmatprep.subr.mxu0 0.0
    %432 = vmatpush1.xpose.msra.mxu0 %v419
    %433 = vmatprep.subr.mxu0 0.0
    %434 = vmatpush1.xpose.msra.mxu0 %v421
    %435 = vmatprep.subr.mxu0 0.0
    %436 = vmatpush1.xpose.msra.mxu0 %v419
    %437 = vmatprep.subr.mxu0 0.0
    %438 = vmatpush1.xpose.msra.mxu0 %v421
    %439 = vmatprep.subr.mxu0 0.0
    %440 = vmatpush1.xpose.msra.mxu0 0.0
    %441 = vmatprep.subr.mxu0 0.0
    %442 = vmatpush1.xpose.msra.mxu0 0.0
    %443 = vmatprep.subr.mxu0 0.0
    %444 = vmatpush1.xpose.msra.mxu0 0.0
    %445 = vmatprep.subr.mxu0 0.0
    %446 = vmatpush1.xpose.msra.mxu0 0.0
    %447 = vmatprep.subr.mxu0 0.0
    %448 = vmatpush1.xpose.msra.mxu0 0.0
    %449 = vmatprep.subr.mxu0 0.0
    %450 = vmatpush1.xpose.msra.mxu0 0.0
    %451 = vmatprep.subr.mxu0 0.0
    %452 = vmatpush1.xpose.msra.mxu0 0.0
    %453 = vmatprep.subr.mxu0 0.0
    %454 = vmatpush1.xpose.msra.mxu0 0.0
    %455 = vmatprep.subr.mxu0 0.0
    %456 = vmatpush1.xpose.msra.mxu0 0.0
    %457 = vmatprep.subr.mxu0 0.0
    %458 = vmatpush1.xpose.msra.mxu0 0.0
    %459 = vmatprep.subr.mxu0 0.0
    %460 = vmatpush1.xpose.msra.mxu0 0.0
    %461 = vmatprep.subr.mxu0 0.0
    %462 = vmatpush1.xpose.msra.mxu0 0.0
    %463 = vmatprep.subr.mxu0 0.0
    %464 = vmatpush1.xpose.msra.mxu0 0.0
    %465 = vmatprep.subr.mxu0 0.0
    %466 = vmatpush1.xpose.msra.mxu0 0.0
    %467 = vmatprep.subr.mxu0 0.0
    %468 = vmatpush1.xpose.msra.mxu0 0.0
    %469 = vmatprep.subr.mxu0 0.0
    %470 = vmatpush1.xpose.msra.mxu0 0.0
    %471 = vmatprep.subr.mxu0 0.0
    %472 = vmatpush1.xpose.msra.mxu0 0.0
    %473 = vmatprep.subr.mxu0 0.0
    %474 = vmatpush1.xpose.msra.mxu0 0.0
    %475 = vmatprep.subr.mxu0 0.0
    %476 = vmatpush1.xpose.msra.mxu0 0.0
    %477 = vmatprep.subr.mxu0 0.0
    %478 = vmatpush1.xpose.msra.mxu0 0.0
    %479 = vmatprep.subr.mxu0 0.0
    %480 = vmatpush1.xpose.msra.mxu0 0.0
    %481 = vmatprep.subr.mxu0 0.0
    %482 = vmatpush1.xpose.msra.mxu0 0.0
    %483 = vmatprep.subr.mxu0 0.0
    %484 = vmatpush1.xpose.msra.mxu0 0.0
    %485 = vmatprep.subr.mxu0 0.0
    %486 = vmatpush1.xpose.msra.mxu0 0.0
    %487 = vmatprep.mubr.f32.mxu0 0.0
    %488 = vmatmul.mubr.f32.gmra.mrb[0].mxu0 %v396
    %v489 = vpop.f32.mrb[0].mxu0
    %v490 = vadd.f32 %v137, %v489
    %v491 = vpop.f32.mrb[0].mxu0
    %492 = vmatprep.mubr.f32.mxu0 0.0
    %493 = vmatmul.mubr.f32.gmra.mrb[0].mxu0 %v399
    %v494 = vpop.f32.mrb[0].mxu0
    %v495 = vadd.f32 %v138, %v494
    %v496 = vpop.f32.mrb[0].mxu0
    %497 = vmatprep.mubr.f32.mxu0 0.0
    %498 = vmatmul.mubr.f32.gmra.mrb[0].mxu0 %v402
    %v499 = vpop.f32.mrb[0].mxu0
    %v500 = vadd.f32 %v139, %v499
    %v501 = vpop.f32.mrb[0].mxu0
    %502 = vmatprep.mubr.f32.mxu0 0.0
    %503 = vmatmul.mubr.f32.gmra.mrb[0].mxu0 %v405
    %v504 = vpop.f32.mrb[0].mxu0
    %v505 = vadd.f32 %v140, %v504
    %v506 = vpop.f32.mrb[0].mxu0
    %507 = vmatprep.mubr.f32.mxu0 0.0
    %508 = vmatmul.mubr.f32.gmra.mrb[0].mxu0 %v408
    %v509 = vpop.f32.mrb[0].mxu0
    %v510 = vadd.f32 %v141, %v509
    %v511 = vpop.f32.mrb[0].mxu0
    %512 = vmatprep.mubr.f32.mxu0 0.0
    %513 = vmatmul.mubr.f32.gmra.mrb[0].mxu0 %v411
    %v514 = vpop.f32.mrb[0].mxu0
    %v515 = vadd.f32 %v142, %v514
    %v516 = vpop.f32.mrb[0].mxu0
    %517 = vmatprep.mubr.f32.mxu0 0.0
    %518 = vmatmul.mubr.f32.gmra.mrb[0].mxu0 %v414
    %v519 = vpop.f32.mrb[0].mxu0
    %v520 = vadd.f32 %v143, %v519
    %v521 = vpop.f32.mrb[0].mxu0
    %522 = vmatprep.mubr.f32.mxu0 0.0
    %523 = vmatmul.mubr.f32.gmra.mrb[0].mxu0 %v417
    %v524 = vpop.f32.mrb[0].mxu0
    %v525 = vadd.f32 %v144, %v524
    %v526 = vpop.f32.mrb[0].mxu0
    %527 = vdwg.mxu0
    %vm528 = vcmask 523264
    %v529 = vsel %vm528, %v490, -inf
    %530 = vmax.xlane.f32.xlu0 %v529
    %v531 = vpop.xlane.xlu0 %530
    %v532 = vsel %vm528, %v495, -inf
    %533 = vmax.xlane.f32.xlu0 %v532
    %v534 = vpop.xlane.xlu0 %533
    %v535 = vsel %vm528, %v500, -inf
    %536 = vmax.xlane.f32.xlu0 %v535
    %v537 = vpop.xlane.xlu0 %536
    %v538 = vsel %vm528, %v505, -inf
    %539 = vmax.xlane.f32.xlu0 %v538
    %v540 = vpop.xlane.xlu0 %539
    %v541 = vsel %vm528, %v510, -inf
    %542 = vmax.xlane.f32.xlu0 %v541
    %v543 = vpop.xlane.xlu0 %542
    %v544 = vsel %vm528, %v515, -inf
    %545 = vmax.xlane.f32.xlu0 %v544
    %v546 = vpop.xlane.xlu0 %545
    %v547 = vsel %vm528, %v520, -inf
    %548 = vmax.xlane.f32.xlu0 %v547
    %v549 = vpop.xlane.xlu0 %548
    %v550 = vsel %vm528, %v525, -inf
    %551 = vmax.xlane.f32.xlu0 %v550
    %v552 = vpop.xlane.xlu0 %551
    %v553 = vsub.f32 %v490, %v531
    %v554 = vsub.f32 %v495, %v534
    %v555 = vsub.f32 %v500, %v537
    %v556 = vsub.f32 %v505, %v540
    %v557 = vsub.f32 %v510, %v543
    %v558 = vsub.f32 %v515, %v546
    %v559 = vsub.f32 %v520, %v549
    %v560 = vsub.f32 %v525, %v552
    %v561 = vmul.f32 %v553, 1.442695
    %v562 = vpow.pop %v561
    %v563 = vmul.f32 %v554, 1.442695
    %v564 = vpow.pop %v563
    %v565 = vmul.f32 %v555, 1.442695
    %v566 = vpow.pop %v565
    %v567 = vmul.f32 %v556, 1.442695
    %v568 = vpow.pop %v567
    %v569 = vmul.f32 %v557, 1.442695
    %v570 = vpow.pop %v569
    %v571 = vmul.f32 %v558, 1.442695
    %v572 = vpow.pop %v571
    %v573 = vmul.f32 %v559, 1.442695
    %v574 = vpow.pop %v573
    %v575 = vmul.f32 %v560, 1.442695
    %v576 = vpow.pop %v575
    %v577 = vsel %vm528, %v562, 0.0
    %578 = vadd.xlane.f32.xlu0 %v577
    %v579 = vpop.xlane.xlu0 %578
    %v580 = vsel %vm528, %v564, 0.0
    %581 = vadd.xlane.f32.xlu0 %v580
    %v582 = vpop.xlane.xlu0 %581
    %v583 = vsel %vm528, %v566, 0.0
    %584 = vadd.xlane.f32.xlu0 %v583
    %v585 = vpop.xlane.xlu0 %584
    %v586 = vsel %vm528, %v568, 0.0
    %587 = vadd.xlane.f32.xlu0 %v586
    %v588 = vpop.xlane.xlu0 %587
    %v589 = vsel %vm528, %v570, 0.0
    %590 = vadd.xlane.f32.xlu0 %v589
    %v591 = vpop.xlane.xlu0 %590
    %v592 = vsel %vm528, %v572, 0.0
    %593 = vadd.xlane.f32.xlu0 %v592
    %v594 = vpop.xlane.xlu0 %593
    %v595 = vsel %vm528, %v574, 0.0
    %596 = vadd.xlane.f32.xlu0 %v595
    %v597 = vpop.xlane.xlu0 %596
    %v598 = vsel %vm528, %v576, 0.0
    %599 = vadd.xlane.f32.xlu0 %v598
    %v600 = vpop.xlane.xlu0 %599
    %v601 = vrcp.pop %v579
    %v602 = vrcp.pop %v582
    %v603 = vrcp.pop %v585
    %v604 = vrcp.pop %v588
    %v605 = vrcp.pop %v591
    %v606 = vrcp.pop %v594
    %v607 = vrcp.pop %v597
    %v608 = vrcp.pop %v600
    %v609 = vmul.f32 %v562, %v601
    %v610 = vmul.f32 %v564, %v602
    %v611 = vmul.f32 %v566, %v603
    %v612 = vmul.f32 %v568, %v604
    %v613 = vmul.f32 %v570, %v605
    %v614 = vmul.f32 %v572, %v606
    %v615 = vmul.f32 %v574, %v607
    %v616 = vmul.f32 %v576, %v608
    %625 = vrot.lane.b32.xlu0 %v381, 64
    %v626 = vpop.permute.xlu0 %625
    %627 = vrot.lane.b32.xlu0 %v382, 64
    %v628 = vpop.permute.xlu0 %627
    %629 = vrot.lane.b32.xlu0 %v383, 64
    %v630 = vpop.permute.xlu0 %629
    %631 = vrot.lane.b32.xlu0 %v384, 64
    %v632 = vpop.permute.xlu0 %631
    %633 = vrot.lane.b32.xlu0 %v385, 64
    %v634 = vpop.permute.xlu0 %633
    %635 = vrot.lane.b32.xlu0 %v386, 64
    %v636 = vpop.permute.xlu0 %635
    %637 = vrot.lane.b32.xlu0 %v387, 64
    %v638 = vpop.permute.xlu0 %637
    %639 = vrot.lane.b32.xlu0 %v388, 64
    %v640 = vpop.permute.xlu0 %639
    %v650 = vsel %vm528, %v609, 0
    %v653 = vsel %vm528, %v610, 0
    %v656 = vsel %vm528, %v611, 0
    %v659 = vsel %vm528, %v612, 0
    %v662 = vsel %vm528, %v613, 0
    %v665 = vsel %vm528, %v614, 0
    %v668 = vsel %vm528, %v615, 0
    %v671 = vsel %vm528, %v616, 0
    %673 = vmatprep.subr.mxu0 0.0
    %674 = vmatpush1.msra.mxu0 %v626
    %675 = vmatprep.subr.mxu0 0.0
    %676 = vmatpush1.msra.mxu0 %v628
    %677 = vmatprep.subr.mxu0 0.0
    %678 = vmatpush1.msra.mxu0 %v630
    %679 = vmatprep.subr.mxu0 0.0
    %680 = vmatpush1.msra.mxu0 %v632
    %681 = vmatprep.subr.mxu0 0.0
    %682 = vmatpush1.msra.mxu0 %v634
    %683 = vmatprep.subr.mxu0 0.0
    %684 = vmatpush1.msra.mxu0 %v636
    %685 = vmatprep.subr.mxu0 0.0
    %686 = vmatpush1.msra.mxu0 %v638
    %687 = vmatprep.subr.mxu0 0.0
    %688 = vmatpush1.msra.mxu0 %v640
    %689 = vmatprep.subr.mxu0 0.0
    %690 = vmatpush1.msra.mxu0 0.0
    %691 = vmatprep.subr.mxu0 0.0
    %692 = vmatpush1.msra.mxu0 0.0
    %693 = vmatprep.subr.mxu0 0.0
    %694 = vmatpush1.msra.mxu0 0.0
    %695 = vmatprep.subr.mxu0 0.0
    %696 = vmatpush1.msra.mxu0 0.0
    %697 = vmatprep.subr.mxu0 0.0
    %698 = vmatpush1.msra.mxu0 0.0
    %699 = vmatprep.subr.mxu0 0.0
    %700 = vmatpush1.msra.mxu0 0.0
    %701 = vmatprep.subr.mxu0 0.0
    %702 = vmatpush1.msra.mxu0 0.0
    %703 = vmatprep.subr.mxu0 0.0
    %704 = vmatpush1.msra.mxu0 0.0
    %705 = vmatprep.subr.mxu0 0.0
    %706 = vmatpush1.msra.mxu0 0.0
    %707 = vmatprep.subr.mxu0 0.0
    %708 = vmatpush1.msra.mxu0 0.0
    %709 = vmatprep.subr.mxu0 0.0
    %710 = vmatpush1.msra.mxu0 0.0
    %711 = vmatprep.subr.mxu0 0.0
    %712 = vmatpush1.msra.mxu0 0.0
    %713 = vmatprep.subr.mxu0 0.0
    %714 = vmatpush1.msra.mxu0 0.0
    %715 = vmatprep.subr.mxu0 0.0
    %716 = vmatpush1.msra.mxu0 0.0
    %717 = vmatprep.subr.mxu0 0.0
    %718 = vmatpush1.msra.mxu0 0.0
    %719 = vmatprep.subr.mxu0 0.0
    %720 = vmatpush1.msra.mxu0 0.0
    %721 = vmatprep.subr.mxu0 0.0
    %722 = vmatpush1.msra.mxu0 0.0
    %723 = vmatprep.subr.mxu0 0.0
    %724 = vmatpush1.msra.mxu0 0.0
    %725 = vmatprep.subr.mxu0 0.0
    %726 = vmatpush1.msra.mxu0 0.0
    %727 = vmatprep.subr.mxu0 0.0
    %728 = vmatpush1.msra.mxu0 0.0
    %729 = vmatprep.subr.mxu0 0.0
    %730 = vmatpush1.msra.mxu0 0.0
    %731 = vmatprep.subr.mxu0 0.0
    %732 = vmatpush1.msra.mxu0 0.0
    %733 = vmatprep.subr.mxu0 0.0
    %734 = vmatpush1.msra.mxu0 0.0
    %735 = vmatprep.subr.mxu0 0.0
    %736 = vmatpush1.msra.mxu0 0.0
    %737 = vmatprep.mubr.f32.mxu0 0.0
    %738 = vmatmul.mubr.f32.gmra.mrb[0].mxu0 %v650
    %v739 = vpop.f32.mrb[0].mxu0
    %v740 = vadd.f32 0.0, %v739
    %v741 = vpop.f32.mrb[0].mxu0
    %742 = vmatprep.mubr.f32.mxu0 0.0
    %743 = vmatmul.mubr.f32.gmra.mrb[0].mxu0 %v653
    %v744 = vpop.f32.mrb[0].mxu0
    %v745 = vadd.f32 0.0, %v744
    %v746 = vpop.f32.mrb[0].mxu0
    %747 = vmatprep.mubr.f32.mxu0 0.0
    %748 = vmatmul.mubr.f32.gmra.mrb[0].mxu0 %v656
    %v749 = vpop.f32.mrb[0].mxu0
    %v750 = vadd.f32 0.0, %v749
    %v751 = vpop.f32.mrb[0].mxu0
    %752 = vmatprep.mubr.f32.mxu0 0.0
    %753 = vmatmul.mubr.f32.gmra.mrb[0].mxu0 %v659
    %v754 = vpop.f32.mrb[0].mxu0
    %v755 = vadd.f32 0.0, %v754
    %v756 = vpop.f32.mrb[0].mxu0
    %757 = vmatprep.mubr.f32.mxu0 0.0
    %758 = vmatmul.mubr.f32.gmra.mrb[0].mxu0 %v662
    %v759 = vpop.f32.mrb[0].mxu0
    %v760 = vadd.f32 0.0, %v759
    %v761 = vpop.f32.mrb[0].mxu0
    %762 = vmatprep.mubr.f32.mxu0 0.0
    %763 = vmatmul.mubr.f32.gmra.mrb[0].mxu0 %v665
    %v764 = vpop.f32.mrb[0].mxu0
    %v765 = vadd.f32 0.0, %v764
    %v766 = vpop.f32.mrb[0].mxu0
    %767 = vmatprep.mubr.f32.mxu0 0.0
    %768 = vmatmul.mubr.f32.gmra.mrb[0].mxu0 %v668
    %v769 = vpop.f32.mrb[0].mxu0
    %v770 = vadd.f32 0.0, %v769
    %v771 = vpop.f32.mrb[0].mxu0
    %772 = vmatprep.mubr.f32.mxu0 0.0
    %773 = vmatmul.mubr.f32.gmra.mrb[0].mxu0 %v671
    %v774 = vpop.f32.mrb[0].mxu0
    %v775 = vadd.f32 0.0, %v774
    %v776 = vpop.f32.mrb[0].mxu0
    %777 = vdwg.mxu0
    %782 = vrot.lane.b32.xlu0 %v238, 32
    %v783 = vpop.permute.xlu0 %782
    %784 = vrot.lane.b32.xlu0 %v239, 32
    %v785 = vpop.permute.xlu0 %784
    %786 = vrot.lane.b32.xlu0 %v240, 32
    %v787 = vpop.permute.xlu0 %786
    %788 = vrot.lane.b32.xlu0 %v241, 32
    %v789 = vpop.permute.xlu0 %788
    %v795 = vsel %vm259, %v740, 0
    %v798 = vsel %vm259, %v745, 0
    %v801 = vsel %vm259, %v750, 0
    %v804 = vsel %vm259, %v755, 0
    %v807 = vsel %vm259, %v760, 0
    %v810 = vsel %vm259, %v765, 0
    %v813 = vsel %vm259, %v770, 0
    %v816 = vsel %vm259, %v775, 0
    %818 = vmatprep.subr.mxu0 0.0
    %819 = vmatpush1.msra.mxu0 %v783
    %820 = vmatprep.subr.mxu0 0.0
    %821 = vmatpush1.msra.mxu0 %v785
    %822 = vmatprep.subr.mxu0 0.0
    %823 = vmatpush1.msra.mxu0 %v787
    %824 = vmatprep.subr.mxu0 0.0
    %825 = vmatpush1.msra.mxu0 %v789
    %826 = vmatprep.subr.mxu0 0.0
    %827 = vmatpush1.msra.mxu0 0.0
    %828 = vmatprep.subr.mxu0 0.0
    %829 = vmatpush1.msra.mxu0 0.0
    %830 = vmatprep.subr.mxu0 0.0
    %831 = vmatpush1.msra.mxu0 0.0
    %832 = vmatprep.subr.mxu0 0.0
    %833 = vmatpush1.msra.mxu0 0.0
    %834 = vmatprep.subr.mxu0 0.0
    %835 = vmatpush1.msra.mxu0 0.0
    %836 = vmatprep.subr.mxu0 0.0
    %837 = vmatpush1.msra.mxu0 0.0
    %838 = vmatprep.subr.mxu0 0.0
    %839 = vmatpush1.msra.mxu0 0.0
    %840 = vmatprep.subr.mxu0 0.0
    %841 = vmatpush1.msra.mxu0 0.0
    %842 = vmatprep.subr.mxu0 0.0
    %843 = vmatpush1.msra.mxu0 0.0
    %844 = vmatprep.subr.mxu0 0.0
    %845 = vmatpush1.msra.mxu0 0.0
    %846 = vmatprep.subr.mxu0 0.0
    %847 = vmatpush1.msra.mxu0 0.0
    %848 = vmatprep.subr.mxu0 0.0
    %849 = vmatpush1.msra.mxu0 0.0
    %850 = vmatprep.subr.mxu0 0.0
    %851 = vmatpush1.msra.mxu0 0.0
    %852 = vmatprep.subr.mxu0 0.0
    %853 = vmatpush1.msra.mxu0 0.0
    %854 = vmatprep.subr.mxu0 0.0
    %855 = vmatpush1.msra.mxu0 0.0
    %856 = vmatprep.subr.mxu0 0.0
    %857 = vmatpush1.msra.mxu0 0.0
    %858 = vmatprep.subr.mxu0 0.0
    %859 = vmatpush1.msra.mxu0 0.0
    %860 = vmatprep.subr.mxu0 0.0
    %861 = vmatpush1.msra.mxu0 0.0
    %862 = vmatprep.subr.mxu0 0.0
    %863 = vmatpush1.msra.mxu0 0.0
    %864 = vmatprep.subr.mxu0 0.0
    %865 = vmatpush1.msra.mxu0 0.0
    %866 = vmatprep.subr.mxu0 0.0
    %867 = vmatpush1.msra.mxu0 0.0
    %868 = vmatprep.subr.mxu0 0.0
    %869 = vmatpush1.msra.mxu0 0.0
    %870 = vmatprep.subr.mxu0 0.0
    %871 = vmatpush1.msra.mxu0 0.0
    %872 = vmatprep.subr.mxu0 0.0
    %873 = vmatpush1.msra.mxu0 0.0
    %874 = vmatprep.subr.mxu0 0.0
    %875 = vmatpush1.msra.mxu0 0.0
    %876 = vmatprep.subr.mxu0 0.0
    %877 = vmatpush1.msra.mxu0 0.0
    %878 = vmatprep.subr.mxu0 0.0
    %879 = vmatpush1.msra.mxu0 0.0
    %880 = vmatprep.subr.mxu0 0.0
    %881 = vmatpush1.msra.mxu0 0.0
    %882 = vmatprep.mubr.f32.mxu0 0.0
    %883 = vmatmul.mubr.f32.gmra.mrb[0].mxu0 %v795
    %v884 = vpop.f32.mrb[0].mxu0
    %v885 = vadd.f32 0.0, %v884
    %v886 = vpop.f32.mrb[0].mxu0
    %887 = vmatprep.mubr.f32.mxu0 0.0
    %888 = vmatmul.mubr.f32.gmra.mrb[0].mxu0 %v798
    %v889 = vpop.f32.mrb[0].mxu0
    %v890 = vadd.f32 0.0, %v889
    %v891 = vpop.f32.mrb[0].mxu0
    %892 = vmatprep.mubr.f32.mxu0 0.0
    %893 = vmatmul.mubr.f32.gmra.mrb[0].mxu0 %v801
    %v894 = vpop.f32.mrb[0].mxu0
    %v895 = vadd.f32 0.0, %v894
    %v896 = vpop.f32.mrb[0].mxu0
    %897 = vmatprep.mubr.f32.mxu0 0.0
    %898 = vmatmul.mubr.f32.gmra.mrb[0].mxu0 %v804
    %v899 = vpop.f32.mrb[0].mxu0
    %v900 = vadd.f32 0.0, %v899
    %v901 = vpop.f32.mrb[0].mxu0
    %902 = vmatprep.mubr.f32.mxu0 0.0
    %903 = vmatmul.mubr.f32.gmra.mrb[0].mxu0 %v807
    %v904 = vpop.f32.mrb[0].mxu0
    %v905 = vadd.f32 0.0, %v904
    %v906 = vpop.f32.mrb[0].mxu0
    %907 = vmatprep.mubr.f32.mxu0 0.0
    %908 = vmatmul.mubr.f32.gmra.mrb[0].mxu0 %v810
    %v909 = vpop.f32.mrb[0].mxu0
    %v910 = vadd.f32 0.0, %v909
    %v911 = vpop.f32.mrb[0].mxu0
    %912 = vmatprep.mubr.f32.mxu0 0.0
    %913 = vmatmul.mubr.f32.gmra.mrb[0].mxu0 %v813
    %v914 = vpop.f32.mrb[0].mxu0
    %v915 = vadd.f32 0.0, %v914
    %v916 = vpop.f32.mrb[0].mxu0
    %917 = vmatprep.mubr.f32.mxu0 0.0
    %918 = vmatmul.mubr.f32.gmra.mrb[0].mxu0 %v816
    %v919 = vpop.f32.mrb[0].mxu0
    %v920 = vadd.f32 0.0, %v919
    %v921 = vpop.f32.mrb[0].mxu0
    %922 = vdwg.mxu0
    %v923 = vadd.f32 %v885, %v895
    %v924 = vadd.f32 %v890, %v900
    %v925 = vadd.f32 %v923, %v905
    %v926 = vadd.f32 %v924, %v910
    %v927 = vadd.f32 %v925, %v915
    %v928 = vadd.f32 %v926, %v920
    %v929 = vld [vmem:[#allocation8 + $0x2] sm:$0x1]
    %v930 = vlaneseq
    %v931 = vshrl.u32 %v930, 7
    %v932 = vsub.s32 0, %v931
    %v933 = vrot.slane %v929, %v932
    %v934 = vadd.f32 %v927, %v933
    %v935 = vadd.f32 %v928, %v933
    %v936 = vadd.f32 %v230, %v934
    %v937 = vadd.f32 %v235, %v935
    %v938 = vld [vmem:[#allocation8 + $0x3] sm:$0x1]
    %v939 = vld [vmem:[#allocation8 + $0x4] sm:$0x1]
    %v940 = vsel %vm259, %v936, 0.0
    %941 = vadd.xlane.f32.xlu0 %v940
    %v942 = vpop.xlane.xlu0 %941
    %v943 = vsel %vm259, %v937, 0.0
    %944 = vadd.xlane.f32.xlu0 %v943
    %v945 = vpop.xlane.xlu0 %944
    %v946 = vrcp.pop 32.0
    %v947 = vmul.f32 %v942, %v946
    %v948 = vmul.f32 %v945, %v946
    %v949 = vsub.f32 %v936, %v947
    %v950 = vsub.f32 %v937, %v948
    %v951 = vmul.f32 %v949, %v949
    %v952 = vmul.f32 %v950, %v950
    %v953 = vsel %vm259, %v951, 0.0
    %954 = vadd.xlane.f32.xlu0 %v953
    %v955 = vpop.xlane.xlu0 %954
    %v956 = vsel %vm259, %v952, 0.0
    %957 = vadd.xlane.f32.xlu0 %v956
    %v958 = vpop.xlane.xlu0 %957
    %v959 = vmul.f32 %v955, %v946
    %v960 = vmul.f32 %v958, %v946
    %v961 = vadd.f32 %v959, 1e-05
    %v962 = vadd.f32 %v960, 1e-05
    %v963 = vrsqrt.pop %v961
    %v964 = vrsqrt.pop %v962
    %v965 = vmul.f32 %v949, %v963
    %v966 = vmul.f32 %v950, %v964
    %v967 = vlaneseq
    %v968 = vshrl.u32 %v967, 7
    %v969 = vsub.s32 0, %v968
    %v970 = vrot.slane %v938, %v969
    %v971 = vmul.f32 %v965, %v970
    %v972 = vmul.f32 %v966, %v970
    %v973 = vlaneseq
    %v974 = vshrl.u32 %v973, 7
    %v975 = vsub.s32 0, %v974
    %v976 = vrot.slane %v939, %v975
    %v977 = vadd.f32 %v971, %v976
    %v978 = vadd.f32 %v972, %v976
    %v979 = vld [vmem:[#allocation8 + $0x5] sm:$0x1]
    %v980 = vlaneseq
    %v981 = vshrl.u32 %v980, 7
    %v982 = vsub.s32 0, %v981
    %v983 = vrot.slane %v979, %v982
    %v985 = vsel %vm259, %v977, 0
    %v988 = vsel %vm259, %v978, 0
    %990 = vmatprep.subr.mxu0 0.0
    %991 = vmatpush1.msra.mxu0 %v242
    %992 = vmatprep.subr.mxu0 0.0
    %993 = vmatpush1.msra.mxu0 %v243
    %994 = vmatprep.subr.mxu0 0.0
    %995 = vmatpush1.msra.mxu0 %v244
    %996 = vmatprep.subr.mxu0 0.0
    %997 = vmatpush1.msra.mxu0 %v245
    %998 = vmatprep.subr.mxu0 0.0
    %999 = vmatpush1.msra.mxu0 0.0
    %1000 = vmatprep.subr.mxu0 0.0
    %1001 = vmatpush1.msra.mxu0 0.0
    %1002 = vmatprep.subr.mxu0 0.0
    %1003 = vmatpush1.msra.mxu0 0.0
    %1004 = vmatprep.subr.mxu0 0.0
    %1005 = vmatpush1.msra.mxu0 0.0
    %1006 = vmatprep.subr.mxu0 0.0
    %1007 = vmatpush1.msra.mxu0 0.0
    %1008 = vmatprep.subr.mxu0 0.0
    %1009 = vmatpush1.msra.mxu0 0.0
    %1010 = vmatprep.subr.mxu0 0.0
    %1011 = vmatpush1.msra.mxu0 0.0
    %1012 = vmatprep.subr.mxu0 0.0
    %1013 = vmatpush1.msra.mxu0 0.0
    %1014 = vmatprep.subr.mxu0 0.0
    %1015 = vmatpush1.msra.mxu0 0.0
    %1016 = vmatprep.subr.mxu0 0.0
    %1017 = vmatpush1.msra.mxu0 0.0
    %1018 = vmatprep.subr.mxu0 0.0
    %1019 = vmatpush1.msra.mxu0 0.0
    %1020 = vmatprep.subr.mxu0 0.0
    %1021 = vmatpush1.msra.mxu0 0.0
    %1022 = vmatprep.subr.mxu0 0.0
    %1023 = vmatpush1.msra.mxu0 0.0
    %1024 = vmatprep.subr.mxu0 0.0
    %1025 = vmatpush1.msra.mxu0 0.0
    %1026 = vmatprep.subr.mxu0 0.0
    %1027 = vmatpush1.msra.mxu0 0.0
    %1028 = vmatprep.subr.mxu0 0.0
    %1029 = vmatpush1.msra.mxu0 0.0
    %1030 = vmatprep.subr.mxu0 0.0
    %1031 = vmatpush1.msra.mxu0 0.0
    %1032 = vmatprep.subr.mxu0 0.0
    %1033 = vmatpush1.msra.mxu0 0.0
    %1034 = vmatprep.subr.mxu0 0.0
    %1035 = vmatpush1.msra.mxu0 0.0
    %1036 = vmatprep.subr.mxu0 0.0
    %1037 = vmatpush1.msra.mxu0 0.0
    %1038 = vmatprep.subr.mxu0 0.0
    %1039 = vmatpush1.msra.mxu0 0.0
    %1040 = vmatprep.subr.mxu0 0.0
    %1041 = vmatpush1.msra.mxu0 0.0
    %1042 = vmatprep.subr.mxu0 0.0
    %1043 = vmatpush1.msra.mxu0 0.0
    %1044 = vmatprep.subr.mxu0 0.0
    %1045 = vmatpush1.msra.mxu0 0.0
    %1046 = vmatprep.subr.mxu0 0.0
    %1047 = vmatpush1.msra.mxu0 0.0
    %1048 = vmatprep.subr.mxu0 0.0
    %1049 = vmatpush1.msra.mxu0 0.0
    %1050 = vmatprep.subr.mxu0 0.0
    %1051 = vmatpush1.msra.mxu0 0.0
    %1052 = vmatprep.subr.mxu0 0.0
    %1053 = vmatpush1.msra.mxu0 0.0
    %1054 = vmatprep.mubr.f32.mxu0 0.0
    %1055 = vmatmul.mubr.f32.gmra.mrb[0].mxu0 %v985
    %v1056 = vpop.f32.mrb[0].mxu0
    %v1057 = vadd.f32 %v983, %v1056
    %v1058 = vpop.f32.mrb[0].mxu0
    %1059 = vmatprep.mubr.f32.mxu0 0.0
    %1060 = vmatmul.mubr.f32.gmra.mrb[0].mxu0 %v988
    %v1061 = vpop.f32.mrb[0].mxu0
    %v1062 = vadd.f32 %v983, %v1061
    %v1063 = vpop.f32.mrb[0].mxu0
    %1064 = vdwg.mxu0
    %v1065 = vmax.f32 %v1057, 0.0
    %v1066 = vmax.f32 %v1062, 0.0
    %v1067 = vld [vmem:[#allocation8 + $0x6] sm:$0x1]
    %v1068 = vlaneseq
    %v1069 = vshrl.u32 %v1068, 7
    %v1070 = vsub.s32 0, %v1069
    %v1071 = vrot.slane %v1067, %v1070
    %v1073 = vsel %vm528, %v1065, 0
    %v1076 = vsel %vm528, %v1066, 0
    %1078 = vmatprep.subr.mxu0 0.0
    %1079 = vmatpush1.msra.mxu0 %v246
    %1080 = vmatprep.subr.mxu0 0.0
    %1081 = vmatpush1.msra.mxu0 %v247
    %1082 = vmatprep.subr.mxu0 0.0
    %1083 = vmatpush1.msra.mxu0 %v248
    %1084 = vmatprep.subr.mxu0 0.0
    %1085 = vmatpush1.msra.mxu0 %v249
    %1086 = vmatprep.subr.mxu0 0.0
    %1087 = vmatpush1.msra.mxu0 %v250
    %1088 = vmatprep.subr.mxu0 0.0
    %1089 = vmatpush1.msra.mxu0 %v251
    %1090 = vmatprep.subr.mxu0 0.0
    %1091 = vmatpush1.msra.mxu0 %v252
    %1092 = vmatprep.subr.mxu0 0.0
    %1093 = vmatpush1.msra.mxu0 %v253
    %1094 = vmatprep.subr.mxu0 0.0
    %1095 = vmatpush1.msra.mxu0 0.0
    %1096 = vmatprep.subr.mxu0 0.0
    %1097 = vmatpush1.msra.mxu0 0.0
    %1098 = vmatprep.subr.mxu0 0.0
    %1099 = vmatpush1.msra.mxu0 0.0
    %1100 = vmatprep.subr.mxu0 0.0
    %1101 = vmatpush1.msra.mxu0 0.0
    %1102 = vmatprep.subr.mxu0 0.0
    %1103 = vmatpush1.msra.mxu0 0.0
    %1104 = vmatprep.subr.mxu0 0.0
    %1105 = vmatpush1.msra.mxu0 0.0
    %1106 = vmatprep.subr.mxu0 0.0
    %1107 = vmatpush1.msra.mxu0 0.0
    %1108 = vmatprep.subr.mxu0 0.0
    %1109 = vmatpush1.msra.mxu0 0.0
    %1110 = vmatprep.subr.mxu0 0.0
    %1111 = vmatpush1.msra.mxu0 0.0
    %1112 = vmatprep.subr.mxu0 0.0
    %1113 = vmatpush1.msra.mxu0 0.0
    %1114 = vmatprep.subr.mxu0 0.0
    %1115 = vmatpush1.msra.mxu0 0.0
    %1116 = vmatprep.subr.mxu0 0.0
    %1117 = vmatpush1.msra.mxu0 0.0
    %1118 = vmatprep.subr.mxu0 0.0
    %1119 = vmatpush1.msra.mxu0 0.0
    %1120 = vmatprep.subr.mxu0 0.0
    %1121 = vmatpush1.msra.mxu0 0.0
    %1122 = vmatprep.subr.mxu0 0.0
    %1123 = vmatpush1.msra.mxu0 0.0
    %1124 = vmatprep.subr.mxu0 0.0
    %1125 = vmatpush1.msra.mxu0 0.0
    %1126 = vmatprep.subr.mxu0 0.0
    %1127 = vmatpush1.msra.mxu0 0.0
    %1128 = vmatprep.subr.mxu0 0.0
    %1129 = vmatpush1.msra.mxu0 0.0
    %1130 = vmatprep.subr.mxu0 0.0
    %1131 = vmatpush1.msra.mxu0 0.0
    %1132 = vmatprep.subr.mxu0 0.0
    %1133 = vmatpush1.msra.mxu0 0.0
    %1134 = vmatprep.subr.mxu0 0.0
    %1135 = vmatpush1.msra.mxu0 0.0
    %1136 = vmatprep.subr.mxu0 0.0
    %1137 = vmatpush1.msra.mxu0 0.0
    %1138 = vmatprep.subr.mxu0 0.0
    %1139 = vmatpush1.msra.mxu0 0.0
    %1140 = vmatprep.subr.mxu0 0.0
    %1141 = vmatpush1.msra.mxu0 0.0
    %1142 = vmatprep.mubr.f32.mxu0 0.0
    %1143 = vmatmul.mubr.f32.gmra.mrb[0].mxu0 %v1073
    %v1144 = vpop.f32.mrb[0].mxu0
    %v1145 = vadd.f32 %v1071, %v1144
    %v1146 = vpop.f32.mrb[0].mxu0
    %1147 = vmatprep.mubr.f32.mxu0 0.0
    %1148 = vmatmul.mubr.f32.gmra.mrb[0].mxu0 %v1076
    %v1149 = vpop.f32.mrb[0].mxu0
    %v1150 = vadd.f32 %v1071, %v1149
    %v1151 = vpop.f32.mrb[0].mxu0
    %1152 = vdwg.mxu0
    %v1153 = vadd.f32 %v977, %v1145
    %v1154 = vadd.f32 %v978, %v1150
    %v1155 = vld [vmem:[#allocation8 + $0x7] sm:$0x1]
    %v1156 = vld [vmem:[#allocation8 + $0x8] sm:$0x1]
    %v1157 = vsel %vm259, %v1153, 0.0
    %1158 = vadd.xlane.f32.xlu0 %v1157
    %v1159 = vpop.xlane.xlu0 %1158
    %v1160 = vsel %vm259, %v1154, 0.0
    %1161 = vadd.xlane.f32.xlu0 %v1160
    %v1162 = vpop.xlane.xlu0 %1161
    %v1163 = vmul.f32 %v1159, %v946
    %v1164 = vmul.f32 %v1162, %v946
    %v1165 = vsub.f32 %v1153, %v1163
    %v1166 = vsub.f32 %v1154, %v1164
    %v1167 = vmul.f32 %v1165, %v1165
    %v1168 = vmul.f32 %v1166, %v1166
    %v1169 = vsel %vm259, %v1167, 0.0
    %1170 = vadd.xlane.f32.xlu0 %v1169
    %v1171 = vpop.xlane.xlu0 %1170
    %v1172 = vsel %vm259, %v1168, 0.0
    %1173 = vadd.xlane.f32.xlu0 %v1172
    %v1174 = vpop.xlane.xlu0 %1173
    %v1175 = vmul.f32 %v1171, %v946
    %v1176 = vmul.f32 %v1174, %v946
    %v1177 = vadd.f32 %v1175, 1e-05
    %v1178 = vadd.f32 %v1176, 1e-05
    %v1179 = vrsqrt.pop %v1177
    %v1180 = vrsqrt.pop %v1178
    %v1181 = vmul.f32 %v1165, %v1179
    %v1182 = vmul.f32 %v1166, %v1180
    %v1183 = vlaneseq
    %v1184 = vshrl.u32 %v1183, 7
    %v1185 = vsub.s32 0, %v1184
    %v1186 = vrot.slane %v1155, %v1185
    %v1187 = vmul.f32 %v1181, %v1186
    %v1188 = vmul.f32 %v1182, %v1186
    %v1189 = vlaneseq
    %v1190 = vshrl.u32 %v1189, 7
    %v1191 = vsub.s32 0, %v1190
    %v1192 = vrot.slane %v1156, %v1191
    %v1193 = vadd.f32 %v1187, %v1192
    %v1194 = vadd.f32 %v1188, %v1192
    %v1195 = vld [vmem:[#allocation5 + $0x20] sm:$0xff]
    %v1196 = vld [vmem:[#allocation5 + $0x28] sm:$0xff]
    %v1197 = vld [vmem:[#allocation5 + $0x30] sm:$0xff]
    %v1198 = vld [vmem:[#allocation5 + $0x38] sm:$0xff]
    %v1199 = vld [vmem:[%s3] sm:$0xff]
    %v1200 = vld [vmem:[%s3 + $0x8] sm:$0xff]
    %v1201 = vld [vmem:[%s3 + $0x10] sm:$0xff]
    %v1202 = vld [vmem:[%s3 + $0x18] sm:$0xff]
    %v1203 = vld [vmem:[#allocation7] sm:$0xff]
    %v1204 = vld [vmem:[#allocation7 + $0x8] sm:$0xff]
    %v1205 = vld [vmem:[#allocation7 + $0x10] sm:$0xff]
    %v1206 = vld [vmem:[#allocation7 + $0x18] sm:$0xff]
    %v1207 = vld [vmem:[#allocation7 + $0x20] sm:$0xff]
    %v1208 = vld [vmem:[#allocation7 + $0x28] sm:$0xff]
    %v1209 = vld [vmem:[#allocation7 + $0x30] sm:$0xff]
    %v1210 = vld [vmem:[#allocation7 + $0x38] sm:$0xff]
    %v1211 = vld [vmem:[#allocation8 + $0x9] sm:$0x1]
    %v1212 = vlaneseq
    %v1213 = vshrl.u32 %v1212, 7
    %v1214 = vsub.s32 0, %v1213
    %v1215 = vrot.slane %v1211, %v1214
    %v1217 = vsel %vm259, %v1193, 0
    %v1220 = vsel %vm259, %v1194, 0
    %1222 = vmatprep.subr.mxu0 0.0
    %1223 = vmatpush1.msra.mxu0 %v1195
    %1224 = vmatprep.subr.mxu0 0.0
    %1225 = vmatpush1.msra.mxu0 %v1196
    %1226 = vmatprep.subr.mxu0 0.0
    %1227 = vmatpush1.msra.mxu0 %v1197
    %1228 = vmatprep.subr.mxu0 0.0
    %1229 = vmatpush1.msra.mxu0 %v1198
    %1230 = vmatprep.subr.mxu0 0.0
    %1231 = vmatpush1.msra.mxu0 0.0
    %1232 = vmatprep.subr.mxu0 0.0
    %1233 = vmatpush1.msra.mxu0 0.0
    %1234 = vmatprep.subr.mxu0 0.0
    %1235 = vmatpush1.msra.mxu0 0.0
    %1236 = vmatprep.subr.mxu0 0.0
    %1237 = vmatpush1.msra.mxu0 0.0
    %1238 = vmatprep.subr.mxu0 0.0
    %1239 = vmatpush1.msra.mxu0 0.0
    %1240 = vmatprep.subr.mxu0 0.0
    %1241 = vmatpush1.msra.mxu0 0.0
    %1242 = vmatprep.subr.mxu0 0.0
    %1243 = vmatpush1.msra.mxu0 0.0
    %1244 = vmatprep.subr.mxu0 0.0
    %1245 = vmatpush1.msra.mxu0 0.0
    %1246 = vmatprep.subr.mxu0 0.0
    %1247 = vmatpush1.msra.mxu0 0.0
    %1248 = vmatprep.subr.mxu0 0.0
    %1249 = vmatpush1.msra.mxu0 0.0
    %1250 = vmatprep.subr.mxu0 0.0
    %1251 = vmatpush1.msra.mxu0 0.0
    %1252 = vmatprep.subr.mxu0 0.0
    %1253 = vmatpush1.msra.mxu0 0.0
    %1254 = vmatprep.subr.mxu0 0.0
    %1255 = vmatpush1.msra.mxu0 0.0
    %1256 = vmatprep.subr.mxu0 0.0
    %1257 = vmatpush1.msra.mxu0 0.0
    %1258 = vmatprep.subr.mxu0 0.0
    %1259 = vmatpush1.msra.mxu0 0.0
    %1260 = vmatprep.subr.mxu0 0.0
    %1261 = vmatpush1.msra.mxu0 0.0
    %1262 = vmatprep.subr.mxu0 0.0
    %1263 = vmatpush1.msra.mxu0 0.0
    %1264 = vmatprep.subr.mxu0 0.0
    %1265 = vmatpush1.msra.mxu0 0.0
    %1266 = vmatprep.subr.mxu0 0.0
    %1267 = vmatpush1.msra.mxu0 0.0
    %1268 = vmatprep.subr.mxu0 0.0
    %1269 = vmatpush1.msra.mxu0 0.0
    %1270 = vmatprep.subr.mxu0 0.0
    %1271 = vmatpush1.msra.mxu0 0.0
    %1272 = vmatprep.subr.mxu0 0.0
    %1273 = vmatpush1.msra.mxu0 0.0
    %1274 = vmatprep.subr.mxu0 0.0
    %1275 = vmatpush1.msra.mxu0 0.0
    %1276 = vmatprep.subr.mxu0 0.0
    %1277 = vmatpush1.msra.mxu0 0.0
    %1278 = vmatprep.subr.mxu0 0.0
    %1279 = vmatpush1.msra.mxu0 0.0
    %1280 = vmatprep.subr.mxu0 0.0
    %1281 = vmatpush1.msra.mxu0 0.0
    %1282 = vmatprep.subr.mxu0 0.0
    %1283 = vmatpush1.msra.mxu0 0.0
    %1284 = vmatprep.subr.mxu0 0.0
    %1285 = vmatpush1.msra.mxu0 0.0
    %1286 = vmatprep.mubr.f32.mxu0 0.0
    %1287 = vmatmul.mubr.f32.gmra.mrb[0].mxu0 %v1217
    %v1288 = vpop.f32.mrb[0].mxu0
    %v1289 = vadd.f32 %v1215, %v1288
    %v1290 = vpop.f32.mrb[0].mxu0
    %1291 = vmatprep.mubr.f32.mxu0 0.0
    %1292 = vmatmul.mubr.f32.gmra.mrb[0].mxu0 %v1220
    %v1293 = vpop.f32.mrb[0].mxu0
    %v1294 = vadd.f32 %v1215, %v1293
    %v1295 = vpop.f32.mrb[0].mxu0
    %1296 = vdwg.mxu0
    %v1297 = vmul.f32 %v1289, %v113
    %v1298 = vmul.f32 %v1294, %v114
    %v1299 = vmul.f32 %v1289, %v115
    %v1300 = vmul.f32 %v1294, %v116
    %v1301 = vmul.f32 %v1289, %v117
    %v1302 = vmul.f32 %v1294, %v118
    %v1303 = vmul.f32 %v1289, %v119
    %v1304 = vmul.f32 %v1294, %v120
    %v1305 = vmul.f32 %v1289, %v358
    %v1306 = vmul.f32 %v1294, %v360
    %v1307 = vmul.f32 %v1289, %v362
    %v1308 = vmul.f32 %v1294, %v364
    %v1309 = vmul.f32 %v1289, %v366
    %v1310 = vmul.f32 %v1294, %v368
    %v1311 = vmul.f32 %v1289, %v370
    %v1312 = vmul.f32 %v1294, %v372
    %1315 = vrot.lane.b32.xlu0 %v1289, 96
    %v1316 = vpop.permute.xlu0 %1315
    %1317 = vrot.lane.b32.xlu0 %v1294, 96
    %v1318 = vpop.permute.xlu0 %1317
    %v1320 = vsel %vm259, %v1297, 0
    %v1323 = vsel %vm259, %v1298, 0
    %v1326 = vsel %vm259, %v1299, 0
    %v1329 = vsel %vm259, %v1300, 0
    %v1332 = vsel %vm259, %v1301, 0
    %v1335 = vsel %vm259, %v1302, 0
    %v1338 = vsel %vm259, %v1303, 0
    %v1341 = vsel %vm259, %v1304, 0
    %v1343 = vsel %vm259, %v1316, 0
    %v1345 = vsel %vm259, %v1318, 0
    %1347 = vmatprep.subr.mxu0 0.0
    %1348 = vmatpush1.xpose.msra.mxu0 %v1343
    %1349 = vmatprep.subr.mxu0 0.0
    %1350 = vmatpush1.xpose.msra.mxu0 %v1345
    %1351 = vmatprep.subr.mxu0 0.0
    %1352 = vmatpush1.xpose.msra.mxu0 %v1343
    %1353 = vmatprep.subr.mxu0 0.0
    %1354 = vmatpush1.xpose.msra.mxu0 %v1345
    %1355 = vmatprep.subr.mxu0 0.0
    %1356 = vmatpush1.xpose.msra.mxu0 %v1343
    %1357 = vmatprep.subr.mxu0 0.0
    %1358 = vmatpush1.xpose.msra.mxu0 %v1345
    %1359 = vmatprep.subr.mxu0 0.0
    %1360 = vmatpush1.xpose.msra.mxu0 %v1343
    %1361 = vmatprep.subr.mxu0 0.0
    %1362 = vmatpush1.xpose.msra.mxu0 %v1345
    %1363 = vmatprep.subr.mxu0 0.0
    %1364 = vmatpush1.xpose.msra.mxu0 0.0
    %1365 = vmatprep.subr.mxu0 0.0
    %1366 = vmatpush1.xpose.msra.mxu0 0.0
    %1367 = vmatprep.subr.mxu0 0.0
    %1368 = vmatpush1.xpose.msra.mxu0 0.0
    %1369 = vmatprep.subr.mxu0 0.0
    %1370 = vmatpush1.xpose.msra.mxu0 0.0
    %1371 = vmatprep.subr.mxu0 0.0
    %1372 = vmatpush1.xpose.msra.mxu0 0.0
    %1373 = vmatprep.subr.mxu0 0.0
    %1374 = vmatpush1.xpose.msra.mxu0 0.0
    %1375 = vmatprep.subr.mxu0 0.0
    %1376 = vmatpush1.xpose.msra.mxu0 0.0
    %1377 = vmatprep.subr.mxu0 0.0
    %1378 = vmatpush1.xpose.msra.mxu0 0.0
    %1379 = vmatprep.subr.mxu0 0.0
    %1380 = vmatpush1.xpose.msra.mxu0 0.0
    %1381 = vmatprep.subr.mxu0 0.0
    %1382 = vmatpush1.xpose.msra.mxu0 0.0
    %1383 = vmatprep.subr.mxu0 0.0
    %1384 = vmatpush1.xpose.msra.mxu0 0.0
    %1385 = vmatprep.subr.mxu0 0.0
    %1386 = vmatpush1.xpose.msra.mxu0 0.0
    %1387 = vmatprep.subr.mxu0 0.0
    %1388 = vmatpush1.xpose.msra.mxu0 0.0
    %1389 = vmatprep.subr.mxu0 0.0
    %1390 = vmatpush1.xpose.msra.mxu0 0.0
    %1391 = vmatprep.subr.mxu0 0.0
    %1392 = vmatpush1.xpose.msra.mxu0 0.0
    %1393 = vmatprep.subr.mxu0 0.0
    %1394 = vmatpush1.xpose.msra.mxu0 0.0
    %1395 = vmatprep.subr.mxu0 0.0
    %1396 = vmatpush1.xpose.msra.mxu0 0.0
    %1397 = vmatprep.subr.mxu0 0.0
    %1398 = vmatpush1.xpose.msra.mxu0 0.0
    %1399 = vmatprep.subr.mxu0 0.0
    %1400 = vmatpush1.xpose.msra.mxu0 0.0
    %1401 = vmatprep.subr.mxu0 0.0
    %1402 = vmatpush1.xpose.msra.mxu0 0.0
    %1403 = vmatprep.subr.mxu0 0.0
    %1404 = vmatpush1.xpose.msra.mxu0 0.0
    %1405 = vmatprep.subr.mxu0 0.0
    %1406 = vmatpush1.xpose.msra.mxu0 0.0
    %1407 = vmatprep.subr.mxu0 0.0
    %1408 = vmatpush1.xpose.msra.mxu0 0.0
    %1409 = vmatprep.subr.mxu0 0.0
    %1410 = vmatpush1.xpose.msra.mxu0 0.0
    %1411 = vmatprep.mubr.f32.mxu0 0.0
    %1412 = vmatmul.mubr.f32.gmra.mrb[0].mxu0 %v1320
    %v1413 = vpop.f32.mrb[0].mxu0
    %v1414 = vadd.f32 %v137, %v1413
    %v1415 = vpop.f32.mrb[0].mxu0
    %1416 = vmatprep.mubr.f32.mxu0 0.0
    %1417 = vmatmul.mubr.f32.gmra.mrb[0].mxu0 %v1323
    %v1418 = vpop.f32.mrb[0].mxu0
    %v1419 = vadd.f32 %v138, %v1418
    %v1420 = vpop.f32.mrb[0].mxu0
    %1421 = vmatprep.mubr.f32.mxu0 0.0
    %1422 = vmatmul.mubr.f32.gmra.mrb[0].mxu0 %v1326
    %v1423 = vpop.f32.mrb[0].mxu0
    %v1424 = vadd.f32 %v139, %v1423
    %v1425 = vpop.f32.mrb[0].mxu0
    %1426 = vmatprep.mubr.f32.mxu0 0.0
    %1427 = vmatmul.mubr.f32.gmra.mrb[0].mxu0 %v1329
    %v1428 = vpop.f32.mrb[0].mxu0
    %v1429 = vadd.f32 %v140, %v1428
    %v1430 = vpop.f32.mrb[0].mxu0
    %1431 = vmatprep.mubr.f32.mxu0 0.0
    %1432 = vmatmul.mubr.f32.gmra.mrb[0].mxu0 %v1332
    %v1433 = vpop.f32.mrb[0].mxu0
    %v1434 = vadd.f32 %v141, %v1433
    %v1435 = vpop.f32.mrb[0].mxu0
    %1436 = vmatprep.mubr.f32.mxu0 0.0
    %1437 = vmatmul.mubr.f32.gmra.mrb[0].mxu0 %v1335
    %v1438 = vpop.f32.mrb[0].mxu0
    %v1439 = vadd.f32 %v142, %v1438
    %v1440 = vpop.f32.mrb[0].mxu0
    %1441 = vmatprep.mubr.f32.mxu0 0.0
    %1442 = vmatmul.mubr.f32.gmra.mrb[0].mxu0 %v1338
    %v1443 = vpop.f32.mrb[0].mxu0
    %v1444 = vadd.f32 %v143, %v1443
    %v1445 = vpop.f32.mrb[0].mxu0
    %1446 = vmatprep.mubr.f32.mxu0 0.0
    %1447 = vmatmul.mubr.f32.gmra.mrb[0].mxu0 %v1341
    %v1448 = vpop.f32.mrb[0].mxu0
    %v1449 = vadd.f32 %v144, %v1448
    %v1450 = vpop.f32.mrb[0].mxu0
    %1451 = vdwg.mxu0
    %v1452 = vsel %vm528, %v1414, -inf
    %1453 = vmax.xlane.f32.xlu0 %v1452
    %v1454 = vpop.xlane.xlu0 %1453
    %v1455 = vsel %vm528, %v1419, -inf
    %1456 = vmax.xlane.f32.xlu0 %v1455
    %v1457 = vpop.xlane.xlu0 %1456
    %v1458 = vsel %vm528, %v1424, -inf
    %1459 = vmax.xlane.f32.xlu0 %v1458
    %v1460 = vpop.xlane.xlu0 %1459
    %v1461 = vsel %vm528, %v1429, -inf
    %1462 = vmax.xlane.f32.xlu0 %v1461
    %v1463 = vpop.xlane.xlu0 %1462
    %v1464 = vsel %vm528, %v1434, -inf
    %1465 = vmax.xlane.f32.xlu0 %v1464
    %v1466 = vpop.xlane.xlu0 %1465
    %v1467 = vsel %vm528, %v1439, -inf
    %1468 = vmax.xlane.f32.xlu0 %v1467
    %v1469 = vpop.xlane.xlu0 %1468
    %v1470 = vsel %vm528, %v1444, -inf
    %1471 = vmax.xlane.f32.xlu0 %v1470
    %v1472 = vpop.xlane.xlu0 %1471
    %v1473 = vsel %vm528, %v1449, -inf
    %1474 = vmax.xlane.f32.xlu0 %v1473
    %v1475 = vpop.xlane.xlu0 %1474
    %v1476 = vsub.f32 %v1414, %v1454
    %v1477 = vsub.f32 %v1419, %v1457
    %v1478 = vsub.f32 %v1424, %v1460
    %v1479 = vsub.f32 %v1429, %v1463
    %v1480 = vsub.f32 %v1434, %v1466
    %v1481 = vsub.f32 %v1439, %v1469
    %v1482 = vsub.f32 %v1444, %v1472
    %v1483 = vsub.f32 %v1449, %v1475
    %v1484 = vmul.f32 %v1476, 1.442695
    %v1485 = vpow.pop %v1484
    %v1486 = vmul.f32 %v1477, 1.442695
    %v1487 = vpow.pop %v1486
    %v1488 = vmul.f32 %v1478, 1.442695
    %v1489 = vpow.pop %v1488
    %v1490 = vmul.f32 %v1479, 1.442695
    %v1491 = vpow.pop %v1490
    %v1492 = vmul.f32 %v1480, 1.442695
    %v1493 = vpow.pop %v1492
    %v1494 = vmul.f32 %v1481, 1.442695
    %v1495 = vpow.pop %v1494
    %v1496 = vmul.f32 %v1482, 1.442695
    %v1497 = vpow.pop %v1496
    %v1498 = vmul.f32 %v1483, 1.442695
    %v1499 = vpow.pop %v1498
    %v1500 = vsel %vm528, %v1485, 0.0
    %1501 = vadd.xlane.f32.xlu0 %v1500
    %v1502 = vpop.xlane.xlu0 %1501
    %v1503 = vsel %vm528, %v1487, 0.0
    %1504 = vadd.xlane.f32.xlu0 %v1503
    %v1505 = vpop.xlane.xlu0 %1504
    %v1506 = vsel %vm528, %v1489, 0.0
    %1507 = vadd.xlane.f32.xlu0 %v1506
    %v1508 = vpop.xlane.xlu0 %1507
    %v1509 = vsel %vm528, %v1491, 0.0
    %1510 = vadd.xlane.f32.xlu0 %v1509
    %v1511 = vpop.xlane.xlu0 %1510
    %v1512 = vsel %vm528, %v1493, 0.0
    %1513 = vadd.xlane.f32.xlu0 %v1512
    %v1514 = vpop.xlane.xlu0 %1513
    %v1515 = vsel %vm528, %v1495, 0.0
    %1516 = vadd.xlane.f32.xlu0 %v1515
    %v1517 = vpop.xlane.xlu0 %1516
    %v1518 = vsel %vm528, %v1497, 0.0
    %1519 = vadd.xlane.f32.xlu0 %v1518
    %v1520 = vpop.xlane.xlu0 %1519
    %v1521 = vsel %vm528, %v1499, 0.0
    %1522 = vadd.xlane.f32.xlu0 %v1521
    %v1523 = vpop.xlane.xlu0 %1522
    %v1524 = vrcp.pop %v1502
    %v1525 = vrcp.pop %v1505
    %v1526 = vrcp.pop %v1508
    %v1527 = vrcp.pop %v1511
    %v1528 = vrcp.pop %v1514
    %v1529 = vrcp.pop %v1517
    %v1530 = vrcp.pop %v1520
    %v1531 = vrcp.pop %v1523
    %v1532 = vmul.f32 %v1485, %v1524
    %v1533 = vmul.f32 %v1487, %v1525
    %v1534 = vmul.f32 %v1489, %v1526
    %v1535 = vmul.f32 %v1491, %v1527
    %v1536 = vmul.f32 %v1493, %v1528
    %v1537 = vmul.f32 %v1495, %v1529
    %v1538 = vmul.f32 %v1497, %v1530
    %v1539 = vmul.f32 %v1499, %v1531
    %1548 = vrot.lane.b32.xlu0 %v1305, 64
    %v1549 = vpop.permute.xlu0 %1548
    %1550 = vrot.lane.b32.xlu0 %v1306, 64
    %v1551 = vpop.permute.xlu0 %1550
    %1552 = vrot.lane.b32.xlu0 %v1307, 64
    %v1553 = vpop.permute.xlu0 %1552
    %1554 = vrot.lane.b32.xlu0 %v1308, 64
    %v1555 = vpop.permute.xlu0 %1554
    %1556 = vrot.lane.b32.xlu0 %v1309, 64
    %v1557 = vpop.permute.xlu0 %1556
    %1558 = vrot.lane.b32.xlu0 %v1310, 64
    %v1559 = vpop.permute.xlu0 %1558
    %1560 = vrot.lane.b32.xlu0 %v1311, 64
    %v1561 = vpop.permute.xlu0 %1560
    %1562 = vrot.lane.b32.xlu0 %v1312, 64
    %v1563 = vpop.permute.xlu0 %1562
    %v1573 = vsel %vm528, %v1532, 0
    %v1576 = vsel %vm528, %v1533, 0
    %v1579 = vsel %vm528, %v1534, 0
    %v1582 = vsel %vm528, %v1535, 0
    %v1585 = vsel %vm528, %v1536, 0
    %v1588 = vsel %vm528, %v1537, 0
    %v1591 = vsel %vm528, %v1538, 0
    %v1594 = vsel %vm528, %v1539, 0
    %1596 = vmatprep.subr.mxu0 0.0
    %1597 = vmatpush1.msra.mxu0 %v1549
    %1598 = vmatprep.subr.mxu0 0.0
    %1599 = vmatpush1.msra.mxu0 %v1551
    %1600 = vmatprep.subr.mxu0 0.0
    %1601 = vmatpush1.msra.mxu0 %v1553
    %1602 = vmatprep.subr.mxu0 0.0
    %1603 = vmatpush1.msra.mxu0 %v1555
    %1604 = vmatprep.subr.mxu0 0.0
    %1605 = vmatpush1.msra.mxu0 %v1557
    %1606 = vmatprep.subr.mxu0 0.0
    %1607 = vmatpush1.msra.mxu0 %v1559
    %1608 = vmatprep.subr.mxu0 0.0
    %1609 = vmatpush1.msra.mxu0 %v1561
    %1610 = vmatprep.subr.mxu0 0.0
    %1611 = vmatpush1.msra.mxu0 %v1563
    %1612 = vmatprep.subr.mxu0 0.0
    %1613 = vmatpush1.msra.mxu0 0.0
    %1614 = vmatprep.subr.mxu0 0.0
    %1615 = vmatpush1.msra.mxu0 0.0
    %1616 = vmatprep.subr.mxu0 0.0
    %1617 = vmatpush1.msra.mxu0 0.0
    %1618 = vmatprep.subr.mxu0 0.0
    %1619 = vmatpush1.msra.mxu0 0.0
    %1620 = vmatprep.subr.mxu0 0.0
    %1621 = vmatpush1.msra.mxu0 0.0
    %1622 = vmatprep.subr.mxu0 0.0
    %1623 = vmatpush1.msra.mxu0 0.0
    %1624 = vmatprep.subr.mxu0 0.0
    %1625 = vmatpush1.msra.mxu0 0.0
    %1626 = vmatprep.subr.mxu0 0.0
    %1627 = vmatpush1.msra.mxu0 0.0
    %1628 = vmatprep.subr.mxu0 0.0
    %1629 = vmatpush1.msra.mxu0 0.0
    %1630 = vmatprep.subr.mxu0 0.0
    %1631 = vmatpush1.msra.mxu0 0.0
    %1632 = vmatprep.subr.mxu0 0.0
    %1633 = vmatpush1.msra.mxu0 0.0
    %1634 = vmatprep.subr.mxu0 0.0
    %1635 = vmatpush1.msra.mxu0 0.0
    %1636 = vmatprep.subr.mxu0 0.0
    %1637 = vmatpush1.msra.mxu0 0.0
    %1638 = vmatprep.subr.mxu0 0.0
    %1639 = vmatpush1.msra.mxu0 0.0
    %1640 = vmatprep.subr.mxu0 0.0
    %1641 = vmatpush1.msra.mxu0 0.0
    %1642 = vmatprep.subr.mxu0 0.0
    %1643 = vmatpush1.msra.mxu0 0.0
    %1644 = vmatprep.subr.mxu0 0.0
    %1645 = vmatpush1.msra.mxu0 0.0
    %1646 = vmatprep.subr.mxu0 0.0
    %1647 = vmatpush1.msra.mxu0 0.0
    %1648 = vmatprep.subr.mxu0 0.0
    %1649 = vmatpush1.msra.mxu0 0.0
    %1650 = vmatprep.subr.mxu0 0.0
    %1651 = vmatpush1.msra.mxu0 0.0
    %1652 = vmatprep.subr.mxu0 0.0
    %1653 = vmatpush1.msra.mxu0 0.0
    %1654 = vmatprep.subr.mxu0 0.0
    %1655 = vmatpush1.msra.mxu0 0.0
    %1656 = vmatprep.subr.mxu0 0.0
    %1657 = vmatpush1.msra.mxu0 0.0
    %1658 = vmatprep.subr.mxu0 0.0
    %1659 = vmatpush1.msra.mxu0 0.0
    %1660 = vmatprep.mubr.f32.mxu0 0.0
    %1661 = vmatmul.mubr.f32.gmra.mrb[0].mxu0 %v1573
    %v1662 = vpop.f32.mrb[0].mxu0
    %v1663 = vadd.f32 0.0, %v1662
    %v1664 = vpop.f32.mrb[0].mxu0
    %1665 = vmatprep.mubr.f32.mxu0 0.0
    %1666 = vmatmul.mubr.f32.gmra.mrb[0].mxu0 %v1576
    %v1667 = vpop.f32.mrb[0].mxu0
    %v1668 = vadd.f32 0.0, %v1667
    %v1669 = vpop.f32.mrb[0].mxu0
    %1670 = vmatprep.mubr.f32.mxu0 0.0
    %1671 = vmatmul.mubr.f32.gmra.mrb[0].mxu0 %v1579
    %v1672 = vpop.f32.mrb[0].mxu0
    %v1673 = vadd.f32 0.0, %v1672
    %v1674 = vpop.f32.mrb[0].mxu0
    %1675 = vmatprep.mubr.f32.mxu0 0.0
    %1676 = vmatmul.mubr.f32.gmra.mrb[0].mxu0 %v1582
    %v1677 = vpop.f32.mrb[0].mxu0
    %v1678 = vadd.f32 0.0, %v1677
    %v1679 = vpop.f32.mrb[0].mxu0
    %1680 = vmatprep.mubr.f32.mxu0 0.0
    %1681 = vmatmul.mubr.f32.gmra.mrb[0].mxu0 %v1585
    %v1682 = vpop.f32.mrb[0].mxu0
    %v1683 = vadd.f32 0.0, %v1682
    %v1684 = vpop.f32.mrb[0].mxu0
    %1685 = vmatprep.mubr.f32.mxu0 0.0
    %1686 = vmatmul.mubr.f32.gmra.mrb[0].mxu0 %v1588
    %v1687 = vpop.f32.mrb[0].mxu0
    %v1688 = vadd.f32 0.0, %v1687
    %v1689 = vpop.f32.mrb[0].mxu0
    %1690 = vmatprep.mubr.f32.mxu0 0.0
    %1691 = vmatmul.mubr.f32.gmra.mrb[0].mxu0 %v1591
    %v1692 = vpop.f32.mrb[0].mxu0
    %v1693 = vadd.f32 0.0, %v1692
    %v1694 = vpop.f32.mrb[0].mxu0
    %1695 = vmatprep.mubr.f32.mxu0 0.0
    %1696 = vmatmul.mubr.f32.gmra.mrb[0].mxu0 %v1594
    %v1697 = vpop.f32.mrb[0].mxu0
    %v1698 = vadd.f32 0.0, %v1697
    %v1699 = vpop.f32.mrb[0].mxu0
    %1700 = vdwg.mxu0
    %1705 = vrot.lane.b32.xlu0 %v1195, 32
    %v1706 = vpop.permute.xlu0 %1705
    %1707 = vrot.lane.b32.xlu0 %v1196, 32
    %v1708 = vpop.permute.xlu0 %1707
    %1709 = vrot.lane.b32.xlu0 %v1197, 32
    %v1710 = vpop.permute.xlu0 %1709
    %1711 = vrot.lane.b32.xlu0 %v1198, 32
    %v1712 = vpop.permute.xlu0 %1711
    %v1718 = vsel %vm259, %v1663, 0
    %v1721 = vsel %vm259, %v1668, 0
    %v1724 = vsel %vm259, %v1673, 0
    %v1727 = vsel %vm259, %v1678, 0
    %v1730 = vsel %vm259, %v1683, 0
    %v1733 = vsel %vm259, %v1688, 0
    %v1736 = vsel %vm259, %v1693, 0
    %v1739 = vsel %vm259, %v1698, 0
    %1741 = vmatprep.subr.mxu0 0.0
    %1742 = vmatpush1.msra.mxu0 %v1706
    %1743 = vmatprep.subr.mxu0 0.0
    %1744 = vmatpush1.msra.mxu0 %v1708
    %1745 = vmatprep.subr.mxu0 0.0
    %1746 = vmatpush1.msra.mxu0 %v1710
    %1747 = vmatprep.subr.mxu0 0.0
    %1748 = vmatpush1.msra.mxu0 %v1712
    %1749 = vmatprep.subr.mxu0 0.0
    %1750 = vmatpush1.msra.mxu0 0.0
    %1751 = vmatprep.subr.mxu0 0.0
    %1752 = vmatpush1.msra.mxu0 0.0
    %1753 = vmatprep.subr.mxu0 0.0
    %1754 = vmatpush1.msra.mxu0 0.0
    %1755 = vmatprep.subr.mxu0 0.0
    %1756 = vmatpush1.msra.mxu0 0.0
    %1757 = vmatprep.subr.mxu0 0.0
    %1758 = vmatpush1.msra.mxu0 0.0
    %1759 = vmatprep.subr.mxu0 0.0
    %1760 = vmatpush1.msra.mxu0 0.0
    %1761 = vmatprep.subr.mxu0 0.0
    %1762 = vmatpush1.msra.mxu0 0.0
    %1763 = vmatprep.subr.mxu0 0.0
    %1764 = vmatpush1.msra.mxu0 0.0
    %1765 = vmatprep.subr.mxu0 0.0
    %1766 = vmatpush1.msra.mxu0 0.0
    %1767 = vmatprep.subr.mxu0 0.0
    %1768 = vmatpush1.msra.mxu0 0.0
    %1769 = vmatprep.subr.mxu0 0.0
    %1770 = vmatpush1.msra.mxu0 0.0
    %1771 = vmatprep.subr.mxu0 0.0
    %1772 = vmatpush1.msra.mxu0 0.0
    %1773 = vmatprep.subr.mxu0 0.0
    %1774 = vmatpush1.msra.mxu0 0.0
    %1775 = vmatprep.subr.mxu0 0.0
    %1776 = vmatpush1.msra.mxu0 0.0
    %1777 = vmatprep.subr.mxu0 0.0
    %1778 = vmatpush1.msra.mxu0 0.0
    %1779 = vmatprep.subr.mxu0 0.0
    %1780 = vmatpush1.msra.mxu0 0.0
    %1781 = vmatprep.subr.mxu0 0.0
    %1782 = vmatpush1.msra.mxu0 0.0
    %1783 = vmatprep.subr.mxu0 0.0
    %1784 = vmatpush1.msra.mxu0 0.0
    %1785 = vmatprep.subr.mxu0 0.0
    %1786 = vmatpush1.msra.mxu0 0.0
    %1787 = vmatprep.subr.mxu0 0.0
    %1788 = vmatpush1.msra.mxu0 0.0
    %1789 = vmatprep.subr.mxu0 0.0
    %1790 = vmatpush1.msra.mxu0 0.0
    %1791 = vmatprep.subr.mxu0 0.0
    %1792 = vmatpush1.msra.mxu0 0.0
    %1793 = vmatprep.subr.mxu0 0.0
    %1794 = vmatpush1.msra.mxu0 0.0
    %1795 = vmatprep.subr.mxu0 0.0
    %1796 = vmatpush1.msra.mxu0 0.0
    %1797 = vmatprep.subr.mxu0 0.0
    %1798 = vmatpush1.msra.mxu0 0.0
    %1799 = vmatprep.subr.mxu0 0.0
    %1800 = vmatpush1.msra.mxu0 0.0
    %1801 = vmatprep.subr.mxu0 0.0
    %1802 = vmatpush1.msra.mxu0 0.0
    %1803 = vmatprep.subr.mxu0 0.0
    %1804 = vmatpush1.msra.mxu0 0.0
    %1805 = vmatprep.mubr.f32.mxu0 0.0
    %1806 = vmatmul.mubr.f32.gmra.mrb[0].mxu0 %v1718
    %v1807 = vpop.f32.mrb[0].mxu0
    %v1808 = vadd.f32 0.0, %v1807
    %v1809 = vpop.f32.mrb[0].mxu0
    %1810 = vmatprep.mubr.f32.mxu0 0.0
    %1811 = vmatmul.mubr.f32.gmra.mrb[0].mxu0 %v1721
    %v1812 = vpop.f32.mrb[0].mxu0
    %v1813 = vadd.f32 0.0, %v1812
    %v1814 = vpop.f32.mrb[0].mxu0
    %1815 = vmatprep.mubr.f32.mxu0 0.0
    %1816 = vmatmul.mubr.f32.gmra.mrb[0].mxu0 %v1724
    %v1817 = vpop.f32.mrb[0].mxu0
    %v1818 = vadd.f32 0.0, %v1817
    %v1819 = vpop.f32.mrb[0].mxu0
    %1820 = vmatprep.mubr.f32.mxu0 0.0
    %1821 = vmatmul.mubr.f32.gmra.mrb[0].mxu0 %v1727
    %v1822 = vpop.f32.mrb[0].mxu0
    %v1823 = vadd.f32 0.0, %v1822
    %v1824 = vpop.f32.mrb[0].mxu0
    %1825 = vmatprep.mubr.f32.mxu0 0.0
    %1826 = vmatmul.mubr.f32.gmra.mrb[0].mxu0 %v1730
    %v1827 = vpop.f32.mrb[0].mxu0
    %v1828 = vadd.f32 0.0, %v1827
    %v1829 = vpop.f32.mrb[0].mxu0
    %1830 = vmatprep.mubr.f32.mxu0 0.0
    %1831 = vmatmul.mubr.f32.gmra.mrb[0].mxu0 %v1733
    %v1832 = vpop.f32.mrb[0].mxu0
    %v1833 = vadd.f32 0.0, %v1832
    %v1834 = vpop.f32.mrb[0].mxu0
    %1835 = vmatprep.mubr.f32.mxu0 0.0
    %1836 = vmatmul.mubr.f32.gmra.mrb[0].mxu0 %v1736
    %v1837 = vpop.f32.mrb[0].mxu0
    %v1838 = vadd.f32 0.0, %v1837
    %v1839 = vpop.f32.mrb[0].mxu0
    %1840 = vmatprep.mubr.f32.mxu0 0.0
    %1841 = vmatmul.mubr.f32.gmra.mrb[0].mxu0 %v1739
    %v1842 = vpop.f32.mrb[0].mxu0
    %v1843 = vadd.f32 0.0, %v1842
    %v1844 = vpop.f32.mrb[0].mxu0
    %1845 = vdwg.mxu0
    %v1846 = vadd.f32 %v1808, %v1818
    %v1847 = vadd.f32 %v1813, %v1823
    %v1848 = vadd.f32 %v1846, %v1828
    %v1849 = vadd.f32 %v1847, %v1833
    %v1850 = vadd.f32 %v1848, %v1838
    %v1851 = vadd.f32 %v1849, %v1843
    %v1852 = vld [vmem:[#allocation8 + $0xa] sm:$0x1]
    %v1853 = vlaneseq
    %v1854 = vshrl.u32 %v1853, 7
    %v1855 = vsub.s32 0, %v1854
    %v1856 = vrot.slane %v1852, %v1855
    %v1857 = vadd.f32 %v1850, %v1856
    %v1858 = vadd.f32 %v1851, %v1856
    %v1859 = vadd.f32 %v1193, %v1857
    %v1860 = vadd.f32 %v1194, %v1858
    %v1861 = vld [vmem:[#allocation8 + $0xb] sm:$0x1]
    %v1862 = vld [vmem:[#allocation8 + $0xc] sm:$0x1]
    %v1863 = vsel %vm259, %v1859, 0.0
    %1864 = vadd.xlane.f32.xlu0 %v1863
    %v1865 = vpop.xlane.xlu0 %1864
    %v1866 = vsel %vm259, %v1860, 0.0
    %1867 = vadd.xlane.f32.xlu0 %v1866
    %v1868 = vpop.xlane.xlu0 %1867
    %v1869 = vmul.f32 %v1865, %v946
    %v1870 = vmul.f32 %v1868, %v946
    %v1871 = vsub.f32 %v1859, %v1869
    %v1872 = vsub.f32 %v1860, %v1870
    %v1873 = vmul.f32 %v1871, %v1871
    %v1874 = vmul.f32 %v1872, %v1872
    %v1875 = vsel %vm259, %v1873, 0.0
    %1876 = vadd.xlane.f32.xlu0 %v1875
    %v1877 = vpop.xlane.xlu0 %1876
    %v1878 = vsel %vm259, %v1874, 0.0
    %1879 = vadd.xlane.f32.xlu0 %v1878
    %v1880 = vpop.xlane.xlu0 %1879
    %v1881 = vmul.f32 %v1877, %v946
    %v1882 = vmul.f32 %v1880, %v946
    %v1883 = vadd.f32 %v1881, 1e-05
    %v1884 = vadd.f32 %v1882, 1e-05
    %v1885 = vrsqrt.pop %v1883
    %v1886 = vrsqrt.pop %v1884
    %v1887 = vmul.f32 %v1871, %v1885
    %v1888 = vmul.f32 %v1872, %v1886
    %v1889 = vlaneseq
    %v1890 = vshrl.u32 %v1889, 7
    %v1891 = vsub.s32 0, %v1890
    %v1892 = vrot.slane %v1861, %v1891
    %v1893 = vmul.f32 %v1887, %v1892
    %v1894 = vmul.f32 %v1888, %v1892
    %v1895 = vlaneseq
    %v1896 = vshrl.u32 %v1895, 7
    %v1897 = vsub.s32 0, %v1896
    %v1898 = vrot.slane %v1862, %v1897
    %v1899 = vadd.f32 %v1893, %v1898
    %v1900 = vadd.f32 %v1894, %v1898
    %v1901 = vld [vmem:[#allocation8 + $0xd] sm:$0x1]
    %v1902 = vlaneseq
    %v1903 = vshrl.u32 %v1902, 7
    %v1904 = vsub.s32 0, %v1903
    %v1905 = vrot.slane %v1901, %v1904
    %1910 = vrot.lane.b32.xlu0 %v1199, 64
    %v1911 = vpop.permute.xlu0 %1910
    %1912 = vrot.lane.b32.xlu0 %v1200, 64
    %v1913 = vpop.permute.xlu0 %1912
    %1914 = vrot.lane.b32.xlu0 %v1201, 64
    %v1915 = vpop.permute.xlu0 %1914
    %1916 = vrot.lane.b32.xlu0 %v1202, 64
    %v1917 = vpop.permute.xlu0 %1916
    %v1923 = vsel %vm259, %v1899, 0
    %v1926 = vsel %vm259, %v1900, 0
    %1928 = vmatprep.subr.mxu0 0.0
    %1929 = vmatpush1.msra.mxu0 %v1911
    %1930 = vmatprep.subr.mxu0 0.0
    %1931 = vmatpush1.msra.mxu0 %v1913
    %1932 = vmatprep.subr.mxu0 0.0
    %1933 = vmatpush1.msra.mxu0 %v1915
    %1934 = vmatprep.subr.mxu0 0.0
    %1935 = vmatpush1.msra.mxu0 %v1917
    %1936 = vmatprep.subr.mxu0 0.0
    %1937 = vmatpush1.msra.mxu0 0.0
    %1938 = vmatprep.subr.mxu0 0.0
    %1939 = vmatpush1.msra.mxu0 0.0
    %1940 = vmatprep.subr.mxu0 0.0
    %1941 = vmatpush1.msra.mxu0 0.0
    %1942 = vmatprep.subr.mxu0 0.0
    %1943 = vmatpush1.msra.mxu0 0.0
    %1944 = vmatprep.subr.mxu0 0.0
    %1945 = vmatpush1.msra.mxu0 0.0
    %1946 = vmatprep.subr.mxu0 0.0
    %1947 = vmatpush1.msra.mxu0 0.0
    %1948 = vmatprep.subr.mxu0 0.0
    %1949 = vmatpush1.msra.mxu0 0.0
    %1950 = vmatprep.subr.mxu0 0.0
    %1951 = vmatpush1.msra.mxu0 0.0
    %1952 = vmatprep.subr.mxu0 0.0
    %1953 = vmatpush1.msra.mxu0 0.0
    %1954 = vmatprep.subr.mxu0 0.0
    %1955 = vmatpush1.msra.mxu0 0.0
    %1956 = vmatprep.subr.mxu0 0.0
    %1957 = vmatpush1.msra.mxu0 0.0
    %1958 = vmatprep.subr.mxu0 0.0
    %1959 = vmatpush1.msra.mxu0 0.0
    %1960 = vmatprep.subr.mxu0 0.0
    %1961 = vmatpush1.msra.mxu0 0.0
    %1962 = vmatprep.subr.mxu0 0.0
    %1963 = vmatpush1.msra.mxu0 0.0
    %1964 = vmatprep.subr.mxu0 0.0
    %1965 = vmatpush1.msra.mxu0 0.0
    %1966 = vmatprep.subr.mxu0 0.0
    %1967 = vmatpush1.msra.mxu0 0.0
    %1968 = vmatprep.subr.mxu0 0.0
    %1969 = vmatpush1.msra.mxu0 0.0
    %1970 = vmatprep.subr.mxu0 0.0
    %1971 = vmatpush1.msra.mxu0 0.0
    %1972 = vmatprep.subr.mxu0 0.0
    %1973 = vmatpush1.msra.mxu0 0.0
    %1974 = vmatprep.subr.mxu0 0.0
    %1975 = vmatpush1.msra.mxu0 0.0
    %1976 = vmatprep.subr.mxu0 0.0
    %1977 = vmatpush1.msra.mxu0 0.0
    %1978 = vmatprep.subr.mxu0 0.0
    %1979 = vmatpush1.msra.mxu0 0.0
    %1980 = vmatprep.subr.mxu0 0.0
    %1981 = vmatpush1.msra.mxu0 0.0
    %1982 = vmatprep.subr.mxu0 0.0
    %1983 = vmatpush1.msra.mxu0 0.0
    %1984 = vmatprep.subr.mxu0 0.0
    %1985 = vmatpush1.msra.mxu0 0.0
    %1986 = vmatprep.subr.mxu0 0.0
    %1987 = vmatpush1.msra.mxu0 0.0
    %1988 = vmatprep.subr.mxu0 0.0
    %1989 = vmatpush1.msra.mxu0 0.0
    %1990 = vmatprep.subr.mxu0 0.0
    %1991 = vmatpush1.msra.mxu0 0.0
    %1992 = vmatprep.mubr.f32.mxu0 0.0
    %1993 = vmatmul.mubr.f32.gmra.mrb[0].mxu0 %v1923
    %v1994 = vpop.f32.mrb[0].mxu0
    %v1995 = vadd.f32 %v1905, %v1994
    %v1996 = vpop.f32.mrb[0].mxu0
    %1997 = vmatprep.mubr.f32.mxu0 0.0
    %1998 = vmatmul.mubr.f32.gmra.mrb[0].mxu0 %v1926
    %v1999 = vpop.f32.mrb[0].mxu0
    %v2000 = vadd.f32 %v1905, %v1999
    %v2001 = vpop.f32.mrb[0].mxu0
    %2002 = vdwg.mxu0
    %v2003 = vmax.f32 %v1995, 0.0
    %v2004 = vmax.f32 %v2000, 0.0
    %v2005 = vld [vmem:[#allocation8 + $0xe] sm:$0x1]
    %v2006 = vlaneseq
    %v2007 = vshrl.u32 %v2006, 7
    %v2008 = vsub.s32 0, %v2007
    %v2009 = vrot.slane %v2005, %v2008
    %2018 = vrot.lane.b32.xlu0 %v1203, 96
    %v2019 = vpop.permute.xlu0 %2018
    %2020 = vrot.lane.b32.xlu0 %v1204, 96
    %v2021 = vpop.permute.xlu0 %2020
    %2022 = vrot.lane.b32.xlu0 %v1205, 96
    %v2023 = vpop.permute.xlu0 %2022
    %2024 = vrot.lane.b32.xlu0 %v1206, 96
    %v2025 = vpop.permute.xlu0 %2024
    %2026 = vrot.lane.b32.xlu0 %v1207, 96
    %v2027 = vpop.permute.xlu0 %2026
    %2028 = vrot.lane.b32.xlu0 %v1208, 96
    %v2029 = vpop.permute.xlu0 %2028
    %2030 = vrot.lane.b32.xlu0 %v1209, 96
    %v2031 = vpop.permute.xlu0 %2030
    %2032 = vrot.lane.b32.xlu0 %v1210, 96
    %v2033 = vpop.permute.xlu0 %2032
    %v2043 = vsel %vm528, %v2003, 0
    %v2046 = vsel %vm528, %v2004, 0
    %2048 = vmatprep.subr.mxu0 0.0
    %2049 = vmatpush1.msra.mxu0 %v2019
    %2050 = vmatprep.subr.mxu0 0.0
    %2051 = vmatpush1.msra.mxu0 %v2021
    %2052 = vmatprep.subr.mxu0 0.0
    %2053 = vmatpush1.msra.mxu0 %v2023
    %2054 = vmatprep.subr.mxu0 0.0
    %2055 = vmatpush1.msra.mxu0 %v2025
    %2056 = vmatprep.subr.mxu0 0.0
    %2057 = vmatpush1.msra.mxu0 %v2027
    %2058 = vmatprep.subr.mxu0 0.0
    %2059 = vmatpush1.msra.mxu0 %v2029
    %2060 = vmatprep.subr.mxu0 0.0
    %2061 = vmatpush1.msra.mxu0 %v2031
    %2062 = vmatprep.subr.mxu0 0.0
    %2063 = vmatpush1.msra.mxu0 %v2033
    %2064 = vmatprep.subr.mxu0 0.0
    %2065 = vmatpush1.msra.mxu0 0.0
    %2066 = vmatprep.subr.mxu0 0.0
    %2067 = vmatpush1.msra.mxu0 0.0
    %2068 = vmatprep.subr.mxu0 0.0
    %2069 = vmatpush1.msra.mxu0 0.0
    %2070 = vmatprep.subr.mxu0 0.0
    %2071 = vmatpush1.msra.mxu0 0.0
    %2072 = vmatprep.subr.mxu0 0.0
    %2073 = vmatpush1.msra.mxu0 0.0
    %2074 = vmatprep.subr.mxu0 0.0
    %2075 = vmatpush1.msra.mxu0 0.0
    %2076 = vmatprep.subr.mxu0 0.0
    %2077 = vmatpush1.msra.mxu0 0.0
    %2078 = vmatprep.subr.mxu0 0.0
    %2079 = vmatpush1.msra.mxu0 0.0
    %2080 = vmatprep.subr.mxu0 0.0
    %2081 = vmatpush1.msra.mxu0 0.0
    %2082 = vmatprep.subr.mxu0 0.0
    %2083 = vmatpush1.msra.mxu0 0.0
    %2084 = vmatprep.subr.mxu0 0.0
    %2085 = vmatpush1.msra.mxu0 0.0
    %2086 = vmatprep.subr.mxu0 0.0
    %2087 = vmatpush1.msra.mxu0 0.0
    %2088 = vmatprep.subr.mxu0 0.0
    %2089 = vmatpush1.msra.mxu0 0.0
    %2090 = vmatprep.subr.mxu0 0.0
    %2091 = vmatpush1.msra.mxu0 0.0
    %2092 = vmatprep.subr.mxu0 0.0
    %2093 = vmatpush1.msra.mxu0 0.0
    %2094 = vmatprep.subr.mxu0 0.0
    %2095 = vmatpush1.msra.mxu0 0.0
    %2096 = vmatprep.subr.mxu0 0.0
    %2097 = vmatpush1.msra.mxu0 0.0
    %2098 = vmatprep.subr.mxu0 0.0
    %2099 = vmatpush1.msra.mxu0 0.0
    %2100 = vmatprep.subr.mxu0 0.0
    %2101 = vmatpush1.msra.mxu0 0.0
    %2102 = vmatprep.subr.mxu0 0.0
    %2103 = vmatpush1.msra.mxu0 0.0
    %2104 = vmatprep.subr.mxu0 0.0
    %2105 = vmatpush1.msra.mxu0 0.0
    %2106 = vmatprep.subr.mxu0 0.0
    %2107 = vmatpush1.msra.mxu0 0.0
    %2108 = vmatprep.subr.mxu0 0.0
    %2109 = vmatpush1.msra.mxu0 0.0
    %2110 = vmatprep.subr.mxu0 0.0
    %2111 = vmatpush1.msra.mxu0 0.0
    %2112 = vmatprep.mubr.f32.mxu0 0.0
    %2113 = vmatmul.mubr.f32.gmra.mrb[0].mxu0 %v2043
    %v2114 = vpop.f32.mrb[0].mxu0
    %v2115 = vadd.f32 %v2009, %v2114
    %v2116 = vpop.f32.mrb[0].mxu0
    %2117 = vmatprep.mubr.f32.mxu0 0.0
    %2118 = vmatmul.mubr.f32.gmra.mrb[0].mxu0 %v2046
    %v2119 = vpop.f32.mrb[0].mxu0
    %v2120 = vadd.f32 %v2009, %v2119
    %v2121 = vpop.f32.mrb[0].mxu0
    %2122 = vdwg.mxu0
    %v2123 = vadd.f32 %v1899, %v2115
    %v2124 = vadd.f32 %v1900, %v2120
    %v2125 = vld [vmem:[#allocation8 + $0xf] sm:$0x1]
    %v2126 = vld [vmem:[#allocation8 + $0x10] sm:$0x1]
    %v2127 = vsel %vm259, %v2123, 0.0
    %2128 = vadd.xlane.f32.xlu0 %v2127
    %v2129 = vpop.xlane.xlu0 %2128
    %v2130 = vsel %vm259, %v2124, 0.0
    %2131 = vadd.xlane.f32.xlu0 %v2130
    %v2132 = vpop.xlane.xlu0 %2131
    %v2133 = vmul.f32 %v2129, %v946
    %v2134 = vmul.f32 %v2132, %v946
    %v2135 = vsub.f32 %v2123, %v2133
    %v2136 = vsub.f32 %v2124, %v2134
    %v2137 = vmul.f32 %v2135, %v2135
    %v2138 = vmul.f32 %v2136, %v2136
    %v2139 = vsel %vm259, %v2137, 0.0
    %2140 = vadd.xlane.f32.xlu0 %v2139
    %v2141 = vpop.xlane.xlu0 %2140
    %v2142 = vsel %vm259, %v2138, 0.0
    %2143 = vadd.xlane.f32.xlu0 %v2142
    %v2144 = vpop.xlane.xlu0 %2143
    %v2145 = vmul.f32 %v2141, %v946
    %v2146 = vmul.f32 %v2144, %v946
    %v2147 = vadd.f32 %v2145, 1e-05
    %v2148 = vadd.f32 %v2146, 1e-05
    %v2149 = vrsqrt.pop %v2147
    %v2150 = vrsqrt.pop %v2148
    %v2151 = vmul.f32 %v2135, %v2149
    %v2152 = vmul.f32 %v2136, %v2150
    %v2153 = vlaneseq
    %v2154 = vshrl.u32 %v2153, 7
    %v2155 = vsub.s32 0, %v2154
    %v2156 = vrot.slane %v2125, %v2155
    %v2157 = vmul.f32 %v2151, %v2156
    %v2158 = vmul.f32 %v2152, %v2156
    %v2159 = vlaneseq
    %v2160 = vshrl.u32 %v2159, 7
    %v2161 = vsub.s32 0, %v2160
    %v2162 = vrot.slane %v2126, %v2161
    %v2163 = vadd.f32 %v2157, %v2162
    %v2164 = vadd.f32 %v2158, %v2162
    %vm2165 = vcmask 130048
    %v2167 = vsel %vm2165, %v147, 0
    %2169 = vmatprep.subr.mxu0 0.0
    %2170 = vmatpush1.msra.mxu0 %v2163
    %2171 = vmatprep.subr.mxu0 0.0
    %2172 = vmatpush1.msra.mxu0 %v2164
    %2173 = vmatprep.subr.mxu0 0.0
    %2174 = vmatpush1.msra.mxu0 0.0
    %2175 = vmatprep.subr.mxu0 0.0
    %2176 = vmatpush1.msra.mxu0 0.0
    %2177 = vmatprep.subr.mxu0 0.0
    %2178 = vmatpush1.msra.mxu0 0.0
    %2179 = vmatprep.subr.mxu0 0.0
    %2180 = vmatpush1.msra.mxu0 0.0
    %2181 = vmatprep.subr.mxu0 0.0
    %2182 = vmatpush1.msra.mxu0 0.0
    %2183 = vmatprep.subr.mxu0 0.0
    %2184 = vmatpush1.msra.mxu0 0.0
    %2185 = vmatprep.subr.mxu0 0.0
    %2186 = vmatpush1.msra.mxu0 0.0
    %2187 = vmatprep.subr.mxu0 0.0
    %2188 = vmatpush1.msra.mxu0 0.0
    %2189 = vmatprep.subr.mxu0 0.0
    %2190 = vmatpush1.msra.mxu0 0.0
    %2191 = vmatprep.subr.mxu0 0.0
    %2192 = vmatpush1.msra.mxu0 0.0
    %2193 = vmatprep.subr.mxu0 0.0
    %2194 = vmatpush1.msra.mxu0 0.0
    %2195 = vmatprep.subr.mxu0 0.0
    %2196 = vmatpush1.msra.mxu0 0.0
    %2197 = vmatprep.subr.mxu0 0.0
    %2198 = vmatpush1.msra.mxu0 0.0
    %2199 = vmatprep.subr.mxu0 0.0
    %2200 = vmatpush1.msra.mxu0 0.0
    %2201 = vmatprep.subr.mxu0 0.0
    %2202 = vmatpush1.msra.mxu0 0.0
    %2203 = vmatprep.subr.mxu0 0.0
    %2204 = vmatpush1.msra.mxu0 0.0
    %2205 = vmatprep.subr.mxu0 0.0
    %2206 = vmatpush1.msra.mxu0 0.0
    %2207 = vmatprep.subr.mxu0 0.0
    %2208 = vmatpush1.msra.mxu0 0.0
    %2209 = vmatprep.subr.mxu0 0.0
    %2210 = vmatpush1.msra.mxu0 0.0
    %2211 = vmatprep.subr.mxu0 0.0
    %2212 = vmatpush1.msra.mxu0 0.0
    %2213 = vmatprep.subr.mxu0 0.0
    %2214 = vmatpush1.msra.mxu0 0.0
    %2215 = vmatprep.subr.mxu0 0.0
    %2216 = vmatpush1.msra.mxu0 0.0
    %2217 = vmatprep.subr.mxu0 0.0
    %2218 = vmatpush1.msra.mxu0 0.0
    %2219 = vmatprep.subr.mxu0 0.0
    %2220 = vmatpush1.msra.mxu0 0.0
    %2221 = vmatprep.subr.mxu0 0.0
    %2222 = vmatpush1.msra.mxu0 0.0
    %2223 = vmatprep.subr.mxu0 0.0
    %2224 = vmatpush1.msra.mxu0 0.0
    %2225 = vmatprep.subr.mxu0 0.0
    %2226 = vmatpush1.msra.mxu0 0.0
    %2227 = vmatprep.subr.mxu0 0.0
    %2228 = vmatpush1.msra.mxu0 0.0
    %2229 = vmatprep.subr.mxu0 0.0
    %2230 = vmatpush1.msra.mxu0 0.0
    %2231 = vmatprep.subr.mxu0 0.0
    %2232 = vmatpush1.msra.mxu0 0.0
    %2233 = vmatprep.mubr.f32.mxu0 0.0
    %2234 = vmatmul.mubr.f32.gmra.mrb[0].mxu0 %v2167
    %v2235 = vpop.f32.mrb[0].mxu0
    %v2236 = vadd.f32 0.0, %v2235
    %v2237 = vpop.f32.mrb[0].mxu0
    %2238 = vdwg.mxu0
    %vm2239 = vcmask 254976
    %2240 = vst.msk [vmem:[#allocation10] sm:$0x3] %vm2239, %v2236
    // Predicated region
    $region42: #{tpu_custom_call.1} parent=1 // pred_check
      _
    $region43: #{tpu_custom_call.1} parent=1 // pred_check_branch
      %2242 = sbr.rel (0) target = $region45
    $region44: #{tpu_custom_call.1} parent=1 // pred_region
      %s2244 = ssub.s32 32, 32
      %2245 = vsyncadd [#allocation4], %s2244
      %s2247 = sshll.u32 [#allocation10], 4
      %s2248 = int_to_ptr.vmem [resolvable:$true] %s2247
      %2250 = dma.vmem_to_hbm [thread:$0]  %s2248, 32, %s6, [#allocation4]
    $region45: #{tpu_custom_call.1} parent=1 // pred_fallthru
      _
    // Predicated region
    $region46: #{tpu_custom_call.1} parent=1 // pred_check
      _
    $region47: #{tpu_custom_call.1} parent=1 // pred_check_branch
      %2252 = sbr.rel (0) target = $region49
    $region48: #{tpu_custom_call.1} parent=1 // pred_region
      %2253 = dma.done [#allocation4], 32
    $region49: #{tpu_custom_call.1} parent=1 // pred_fallthru
      _
    %2254 = vsyncpa [#allocation3], 1
    %2255 = vsyncpa [#allocation6], 1
    %2256 = vsyncpa [#allocation9], 1
    %2257 = vsyncpa [#allocation4], 1

</llo_original>
